<compile_context>
chip_gen: v6e
topology: v6e:2x2x1
jax: 0.10.0
libtpu: 0.0.40
codegen_flags: <defaults>
</compile_context>

<pallas_src>
import functools

import jax
import jax.numpy as jnp
from jax.experimental import pallas as pl
from jax.experimental.pallas import tpu as pltpu


# ---------------------------------------------------------------------------
# Fused Pallas kernel: chain of DAFT blocks for one batch element
# ---------------------------------------------------------------------------
def _make_fused_kernel(num_blocks):
    """Build a kernel chaining `num_blocks` DAFT blocks, feature map resident."""

    def kernel(*refs):
        x_ref, tab_ref = refs[0], refs[1]
        o_ref = refs[-1]
        w_refs = refs[2:-1]

        y = x_ref[0]        # (C, HW)  channel-major; lane dim = HW (dense)
        tab = tab_ref[0]    # (T, 1)   tabular vector as a column

        for b in range(num_blocks):                      # unrolled at trace time
            w1t, b1c, wsbt, bsbc, wct, bcc = w_refs[6 * b: 6 * b + 6]
            c = y.shape[0]

            # global average pool over the spatial (lane) axis -> (C, 1)
            gap = jnp.mean(y, axis=1, keepdims=True)

            # merged bottleneck MLP: single matmul over concat([gap, tab])
            zin = jnp.concatenate([gap, tab], axis=0)                    # (C+T, 1)
            h = jnp.maximum(
                jnp.dot(w1t[...], zin, preferred_element_type=jnp.float32)
                + b1c[...], 0.0)                                         # (hid, 1)

            # merged scale/shift head: one matmul -> (2C, 1), then static slice
            ss = (jnp.dot(wsbt[...], h, preferred_element_type=jnp.float32)
                  + bsbc[...])                                           # (2C, 1)
            scale = ss[:c]                                               # (C, 1)
            shift = ss[c:]                                               # (C, 1)

            # FiLM modulation: per-channel affine, broadcast along lanes
            ymod = y * scale + shift                                     # (C, HW)

            # 1x1 conv as channel matmul (MXU; generic for real U-Net widths) + ReLU
            y = jnp.maximum(
                jnp.dot(wct[...], ymod, preferred_element_type=jnp.float32)
                + bcc[...], 0.0)                                         # (Cout, HW)

        o_ref[0] = y

    return kernel


# ---------------------------------------------------------------------------
# Weight preparation: transpose / merge once in the wrapper (outside the kernel)
# ---------------------------------------------------------------------------
def _prep_block_params(params):
    w1a, w1b, b1, wg, bg, wb, bb, wc, bc = params
    w1t = jnp.concatenate([w1a, w1b], axis=0).T     # (hid, C+T)  merged bottleneck
    b1c = b1.T                                      # (hid, 1)
    wsbt = jnp.concatenate([wg, wb], axis=1).T      # (2C, hid)   merged scale/shift
    bsbc = jnp.concatenate([bg, bb], axis=1).T      # (2C, 1)
    wct = wc.T                                      # (Cout, C)   1x1 conv, column form
    bcc = bc.T                                      # (Cout, 1)
    return (w1t, b1c, wsbt, bsbc, wct, bcc)


# ---------------------------------------------------------------------------
# `Sequential` forward: one fused pallas_call for mod1 -> mod2 -> [mod3]
# ---------------------------------------------------------------------------
def sequential_forward(x_img_nchw, x_tab, params1, params2, params3=None):
    N, C, H, W = x_img_nchw.shape
    HW = H * W
    T = x_tab.shape[1]

    block_params = [params1, params2] + ([params3] if params3 is not None else [])
    preps = [_prep_block_params(p) for p in block_params]

    # channel chaining check (block b+1 consumes block b's output channels)
    c_in = C
    for (_, _, _, _, wct, _) in preps:
        assert wct.shape[1] == c_in, "channel mismatch between chained DAFT blocks"
        c_in = wct.shape[0]
    c_out = c_in

    # Lane-dense, transpose-free layout: NCHW -> (N, C, H*W) is a free reshape.
    x_cm = x_img_nchw.reshape(N, C, HW)
    tab3 = x_tab.reshape(N, T, 1)        # column form for in-kernel matmuls

    flat_w = [w for p in preps for w in p]

    def full_spec(a):
        nd = a.ndim
        return pl.BlockSpec(a.shape, lambda i, n=nd: (0,) * n)

    kernel = _make_fused_kernel(len(preps))

    out = pl.pallas_call(
        kernel,
        out_shape=jax.ShapeDtypeStruct((N, c_out, HW), jnp.float32),
        grid=(N,),
        in_specs=[pl.BlockSpec((1, C, HW), lambda i: (i, 0, 0)),     # feature map
                  pl.BlockSpec((1, T, 1), lambda i: (i, 0, 0))]      # tabular column
                 + [full_spec(w) for w in flat_w],                   # weights (resident)
        out_specs=pl.BlockSpec((1, c_out, HW), lambda i: (i, 0, 0)), # lane-dense output
        compiler_params=pltpu.CompilerParams(
            dimension_semantics=("parallel",)),   # batch grid -> both TCs on v7x
    )(x_cm, tab3, *flat_w)

    return out.reshape(N, c_out, H, W)           # back to NCHW (free reshape)


# ---------------------------------------------------------------------------
# Pure-JAX reference for correctness checking
# ---------------------------------------------------------------------------
def _ref_block(x_nhwc, x_tab, params):
    w1a, w1b, b1, wg, bg, wb, bb, wc, bc = params
    gap = jnp.mean(x_nhwc, axis=(1, 2))                       # (N, C)
    h = jax.nn.relu(gap @ w1a + x_tab @ w1b + b1)             # (N, Hid)
    scale = h @ wg + bg                                       # (N, C)
    shift = h @ wb + bb                                       # (N, C)
    y = x_nhwc * scale[:, None, None, :] + shift[:, None, None, :]
    return jax.nn.relu(jnp.einsum('nhwc,cd->nhwd', y, wc) + bc)


def _ref_sequential(x_img_nchw, x_tab, params1, params2, params3=None):
    x = jnp.transpose(x_img_nchw, (0, 2, 3, 1))
    x = _ref_block(x, x_tab, params1)
    x = _ref_block(x, x_tab, params2)
    if params3 is not None:
        x = _ref_block(x, x_tab, params3)
    return jnp.transpose(x, (0, 3, 1, 2))


# ---------------------------------------------------------------------------
# Deterministic parameter construction
# ---------------------------------------------------------------------------
def make_block_params(key, c_in, c_out, t, hid):
    ks = jax.random.split(key, 9)
    s = 0.1
    return (
        s * jax.random.normal(ks[0], (c_in, hid), jnp.float32),     # w1a (image branch)
        s * jax.random.normal(ks[1], (t, hid), jnp.float32),        # w1b (tabular branch)
        s * jax.random.normal(ks[2], (1, hid), jnp.float32),        # b1
        s * jax.random.normal(ks[3], (hid, c_in), jnp.float32),     # wg  (scale head)
        1.0 + s * jax.random.normal(ks[4], (1, c_in), jnp.float32), # bg  (scale ~ 1)
        s * jax.random.normal(ks[5], (hid, c_in), jnp.float32),     # wb  (shift head)
        s * jax.random.normal(ks[6], (1, c_in), jnp.float32),       # bb
        s * jax.random.normal(ks[7], (c_in, c_out), jnp.float32),   # wc  (1x1 conv)
        s * jax.random.normal(ks[8], (1, c_out), jnp.float32),      # bc
    )


if __name__ == "__main__":
    key = jax.random.PRNGKey(0)
    k_x, k_t, k_p1, k_p2, k_p3 = jax.random.split(key, 5)

    N, C, Hs, Ws = 2, 8, 16, 16     # image features (NCHW, PyTorch convention)
    T, HID = 8, 16                  # tabular dim, bottleneck hidden dim

    x_img = jax.random.normal(k_x, (N, C, Hs, Ws), jnp.float32)
    x_tab = jax.random.normal(k_t, (N, T), jnp.float32)

    params1 = make_block_params(k_p1, C, C, T, HID)   # mod1
    params2 = make_block_params(k_p2, C, C, T, HID)   # mod2
    params3 = make_block_params(k_p3, C, C, T, HID)   # mod3 (optional, exercised here)

    fwd = jax.jit(functools.partial(sequential_forward))
    out = fwd(x_img, x_tab, params1, params2, params3)
    out = jax.block_until_ready(out)

    ref = _ref_sequential(x_img, x_tab, params1, params2, params3)
    assert out.shape == (N, C, Hs, Ws)
    assert jnp.allclose(out, ref, atol=1e-4, rtol=1e-4), "Pallas kernel mismatch vs reference"

    print("KERNEL_OK")
</pallas_src>

<mosaic_0001>
module attributes {stable_mosaic.version = 11 : i64} {
  func.func @kernel(%arg0: i32, %arg1: memref<1x8x256xf32, #tpu.memory_space<vmem>>, %arg2: memref<1x8x1xf32, #tpu.memory_space<vmem>>, %arg3: memref<16x16xf32, #tpu.memory_space<vmem>>, %arg4: memref<16x1xf32, #tpu.memory_space<vmem>>, %arg5: memref<16x16xf32, #tpu.memory_space<vmem>>, %arg6: memref<16x1xf32, #tpu.memory_space<vmem>>, %arg7: memref<8x8xf32, #tpu.memory_space<vmem>>, %arg8: memref<8x1xf32, #tpu.memory_space<vmem>>, %arg9: memref<16x16xf32, #tpu.memory_space<vmem>>, %arg10: memref<16x1xf32, #tpu.memory_space<vmem>>, %arg11: memref<16x16xf32, #tpu.memory_space<vmem>>, %arg12: memref<16x1xf32, #tpu.memory_space<vmem>>, %arg13: memref<8x8xf32, #tpu.memory_space<vmem>>, %arg14: memref<8x1xf32, #tpu.memory_space<vmem>>, %arg15: memref<16x16xf32, #tpu.memory_space<vmem>>, %arg16: memref<16x1xf32, #tpu.memory_space<vmem>>, %arg17: memref<16x16xf32, #tpu.memory_space<vmem>>, %arg18: memref<16x1xf32, #tpu.memory_space<vmem>>, %arg19: memref<8x8xf32, #tpu.memory_space<vmem>>, %arg20: memref<8x1xf32, #tpu.memory_space<vmem>>, %arg21: memref<1x8x256xf32, #tpu.memory_space<vmem>>) attributes {dimension_semantics = [#tpu.dimension_semantics<parallel>], iteration_bounds = array<i64: 2>, scalar_prefetch = 0 : i64, scratch_operands = 0 : i64, tpu.core_type = #tpu.core_type<tc>, window_params = [{transform_indices = @transform_0, window_bounds = array<i64: 1, 8, 256>}, {transform_indices = @transform_1, window_bounds = array<i64: 1, 8, 1>}, {pipeline_mode = #tpu.pipeline_mode<synchronous>, transform_indices = @transform_2, window_bounds = array<i64: 16, 16>}, {pipeline_mode = #tpu.pipeline_mode<synchronous>, transform_indices = @transform_3, window_bounds = array<i64: 16, 1>}, {pipeline_mode = #tpu.pipeline_mode<synchronous>, transform_indices = @transform_4, window_bounds = array<i64: 16, 16>}, {pipeline_mode = #tpu.pipeline_mode<synchronous>, transform_indices = @transform_5, window_bounds = array<i64: 16, 1>}, {pipeline_mode = #tpu.pipeline_mode<synchronous>, transform_indices = @transform_6, window_bounds = array<i64: 8, 8>}, {pipeline_mode = #tpu.pipeline_mode<synchronous>, transform_indices = @transform_7, window_bounds = array<i64: 8, 1>}, {pipeline_mode = #tpu.pipeline_mode<synchronous>, transform_indices = @transform_8, window_bounds = array<i64: 16, 16>}, {pipeline_mode = #tpu.pipeline_mode<synchronous>, transform_indices = @transform_9, window_bounds = array<i64: 16, 1>}, {pipeline_mode = #tpu.pipeline_mode<synchronous>, transform_indices = @transform_10, window_bounds = array<i64: 16, 16>}, {pipeline_mode = #tpu.pipeline_mode<synchronous>, transform_indices = @transform_11, window_bounds = array<i64: 16, 1>}, {pipeline_mode = #tpu.pipeline_mode<synchronous>, transform_indices = @transform_12, window_bounds = array<i64: 8, 8>}, {pipeline_mode = #tpu.pipeline_mode<synchronous>, transform_indices = @transform_13, window_bounds = array<i64: 8, 1>}, {pipeline_mode = #tpu.pipeline_mode<synchronous>, transform_indices = @transform_14, window_bounds = array<i64: 16, 16>}, {pipeline_mode = #tpu.pipeline_mode<synchronous>, transform_indices = @transform_15, window_bounds = array<i64: 16, 1>}, {pipeline_mode = #tpu.pipeline_mode<synchronous>, transform_indices = @transform_16, window_bounds = array<i64: 16, 16>}, {pipeline_mode = #tpu.pipeline_mode<synchronous>, transform_indices = @transform_17, window_bounds = array<i64: 16, 1>}, {pipeline_mode = #tpu.pipeline_mode<synchronous>, transform_indices = @transform_18, window_bounds = array<i64: 8, 8>}, {pipeline_mode = #tpu.pipeline_mode<synchronous>, transform_indices = @transform_19, window_bounds = array<i64: 8, 1>}, {transform_indices = @transform_20, window_bounds = array<i64: 1, 8, 256>}]} {
    %c0 = arith.constant 0 : index
    %c0_0 = arith.constant 0 : index
    %c0_1 = arith.constant 0 : index
    %0 = vector.load %arg1[%c0, %c0_0, %c0_1] : memref<1x8x256xf32, #tpu.memory_space<vmem>>, vector<1x8x256xf32>
    %1 = vector.shape_cast %0 : vector<1x8x256xf32> to vector<8x256xf32>
    %c0_2 = arith.constant 0 : index
    %c0_3 = arith.constant 0 : index
    %c0_4 = arith.constant 0 : index
    %2 = vector.load %arg2[%c0_2, %c0_3, %c0_4] : memref<1x8x1xf32, #tpu.memory_space<vmem>>, vector<1x8x1xf32>
    %3 = vector.shape_cast %2 : vector<1x8x1xf32> to vector<8x1xf32>
    %cst = arith.constant dense<0.000000e+00> : vector<8xf32>
    %4 = vector.multi_reduction <add>, %1, %cst [1] : vector<8x256xf32> to vector<8xf32>
    %5 = vector.shape_cast %4 : vector<8xf32> to vector<8x1xf32>
    %cst_5 = arith.constant 2.560000e+02 : f32
    %6 = vector.broadcast %cst_5 : f32 to vector<8x1xf32>
    %7 = arith.divf %5, %6 : vector<8x1xf32>
    %8 = tpu.concatenate %7, %3 in 0 : vector<8x1xf32>, vector<8x1xf32> -> vector<16x1xf32>
    %c0_6 = arith.constant 0 : index
    %c0_7 = arith.constant 0 : index
    %9 = vector.load %arg3[%c0_6, %c0_7] : memref<16x16xf32, #tpu.memory_space<vmem>>, vector<16x16xf32>
    %cst_8 = arith.constant dense<0.000000e+00> : vector<16x1xf32>
    %10 = tpu.matmul %9, %8, %cst_8 {dimension_numbers = #tpu.dot_dimension_numbers<[1], [0], [0], [1], [0, 0, 1, 1], [], []>} : vector<16x16xf32>, vector<16x1xf32>, vector<16x1xf32> -> vector<16x1xf32>
    %c0_9 = arith.constant 0 : index
    %c0_10 = arith.constant 0 : index
    %11 = vector.load %arg4[%c0_9, %c0_10] : memref<16x1xf32, #tpu.memory_space<vmem>>, vector<16x1xf32>
    %12 = arith.addf %10, %11 : vector<16x1xf32>
    %cst_11 = arith.constant 0.000000e+00 : f32
    %13 = vector.broadcast %cst_11 : f32 to vector<16x1xf32>
    %14 = arith.maximumf %12, %13 : vector<16x1xf32>
    %c0_12 = arith.constant 0 : index
    %c0_13 = arith.constant 0 : index
    %15 = vector.load %arg5[%c0_12, %c0_13] : memref<16x16xf32, #tpu.memory_space<vmem>>, vector<16x16xf32>
    %cst_14 = arith.constant dense<0.000000e+00> : vector<16x1xf32>
    %16 = tpu.matmul %15, %14, %cst_14 {dimension_numbers = #tpu.dot_dimension_numbers<[1], [0], [0], [1], [0, 0, 1, 1], [], []>} : vector<16x16xf32>, vector<16x1xf32>, vector<16x1xf32> -> vector<16x1xf32>
    %c0_15 = arith.constant 0 : index
    %c0_16 = arith.constant 0 : index
    %17 = vector.load %arg6[%c0_15, %c0_16] : memref<16x1xf32, #tpu.memory_space<vmem>>, vector<16x1xf32>
    %18 = arith.addf %16, %17 : vector<16x1xf32>
    %19 = vector.extract_strided_slice %18 {offsets = [0, 0], sizes = [8, 1], strides = [1, 1]} : vector<16x1xf32> to vector<8x1xf32>
    %20 = vector.extract_strided_slice %18 {offsets = [8, 0], sizes = [8, 1], strides = [1, 1]} : vector<16x1xf32> to vector<8x1xf32>
    %21 = vector.broadcast %19 : vector<8x1xf32> to vector<8x256xf32>
    %22 = arith.mulf %1, %21 : vector<8x256xf32>
    %23 = vector.broadcast %20 : vector<8x1xf32> to vector<8x256xf32>
    %24 = arith.addf %22, %23 : vector<8x256xf32>
    %c0_17 = arith.constant 0 : index
    %c0_18 = arith.constant 0 : index
    %25 = vector.load %arg7[%c0_17, %c0_18] : memref<8x8xf32, #tpu.memory_space<vmem>>, vector<8x8xf32>
    %cst_19 = arith.constant dense<0.000000e+00> : vector<8x256xf32>
    %26 = tpu.matmul %25, %24, %cst_19 {dimension_numbers = #tpu.dot_dimension_numbers<[1], [0], [0], [1], [0, 0, 1, 1], [], []>} : vector<8x8xf32>, vector<8x256xf32>, vector<8x256xf32> -> vector<8x256xf32>
    %c0_20 = arith.constant 0 : index
    %c0_21 = arith.constant 0 : index
    %27 = vector.load %arg8[%c0_20, %c0_21] : memref<8x1xf32, #tpu.memory_space<vmem>>, vector<8x1xf32>
    %28 = vector.broadcast %27 : vector<8x1xf32> to vector<8x256xf32>
    %29 = arith.addf %26, %28 : vector<8x256xf32>
    %cst_22 = arith.constant 0.000000e+00 : f32
    %30 = vector.broadcast %cst_22 : f32 to vector<8x256xf32>
    %31 = arith.maximumf %29, %30 : vector<8x256xf32>
    %cst_23 = arith.constant dense<0.000000e+00> : vector<8xf32>
    %32 = vector.multi_reduction <add>, %31, %cst_23 [1] : vector<8x256xf32> to vector<8xf32>
    %33 = vector.shape_cast %32 : vector<8xf32> to vector<8x1xf32>
    %cst_24 = arith.constant 2.560000e+02 : f32
    %34 = vector.broadcast %cst_24 : f32 to vector<8x1xf32>
    %35 = arith.divf %33, %34 : vector<8x1xf32>
    %36 = tpu.concatenate %35, %3 in 0 : vector<8x1xf32>, vector<8x1xf32> -> vector<16x1xf32>
    %c0_25 = arith.constant 0 : index
    %c0_26 = arith.constant 0 : index
    %37 = vector.load %arg9[%c0_25, %c0_26] : memref<16x16xf32, #tpu.memory_space<vmem>>, vector<16x16xf32>
    %cst_27 = arith.constant dense<0.000000e+00> : vector<16x1xf32>
    %38 = tpu.matmul %37, %36, %cst_27 {dimension_numbers = #tpu.dot_dimension_numbers<[1], [0], [0], [1], [0, 0, 1, 1], [], []>} : vector<16x16xf32>, vector<16x1xf32>, vector<16x1xf32> -> vector<16x1xf32>
    %c0_28 = arith.constant 0 : index
    %c0_29 = arith.constant 0 : index
    %39 = vector.load %arg10[%c0_28, %c0_29] : memref<16x1xf32, #tpu.memory_space<vmem>>, vector<16x1xf32>
    %40 = arith.addf %38, %39 : vector<16x1xf32>
    %cst_30 = arith.constant 0.000000e+00 : f32
    %41 = vector.broadcast %cst_30 : f32 to vector<16x1xf32>
    %42 = arith.maximumf %40, %41 : vector<16x1xf32>
    %c0_31 = arith.constant 0 : index
    %c0_32 = arith.constant 0 : index
    %43 = vector.load %arg11[%c0_31, %c0_32] : memref<16x16xf32, #tpu.memory_space<vmem>>, vector<16x16xf32>
    %cst_33 = arith.constant dense<0.000000e+00> : vector<16x1xf32>
    %44 = tpu.matmul %43, %42, %cst_33 {dimension_numbers = #tpu.dot_dimension_numbers<[1], [0], [0], [1], [0, 0, 1, 1], [], []>} : vector<16x16xf32>, vector<16x1xf32>, vector<16x1xf32> -> vector<16x1xf32>
    %c0_34 = arith.constant 0 : index
    %c0_35 = arith.constant 0 : index
    %45 = vector.load %arg12[%c0_34, %c0_35] : memref<16x1xf32, #tpu.memory_space<vmem>>, vector<16x1xf32>
    %46 = arith.addf %44, %45 : vector<16x1xf32>
    %47 = vector.extract_strided_slice %46 {offsets = [0, 0], sizes = [8, 1], strides = [1, 1]} : vector<16x1xf32> to vector<8x1xf32>
    %48 = vector.extract_strided_slice %46 {offsets = [8, 0], sizes = [8, 1], strides = [1, 1]} : vector<16x1xf32> to vector<8x1xf32>
    %49 = vector.broadcast %47 : vector<8x1xf32> to vector<8x256xf32>
    %50 = arith.mulf %31, %49 : vector<8x256xf32>
    %51 = vector.broadcast %48 : vector<8x1xf32> to vector<8x256xf32>
    %52 = arith.addf %50, %51 : vector<8x256xf32>
    %c0_36 = arith.constant 0 : index
    %c0_37 = arith.constant 0 : index
    %53 = vector.load %arg13[%c0_36, %c0_37] : memref<8x8xf32, #tpu.memory_space<vmem>>, vector<8x8xf32>
    %cst_38 = arith.constant dense<0.000000e+00> : vector<8x256xf32>
    %54 = tpu.matmul %53, %52, %cst_38 {dimension_numbers = #tpu.dot_dimension_numbers<[1], [0], [0], [1], [0, 0, 1, 1], [], []>} : vector<8x8xf32>, vector<8x256xf32>, vector<8x256xf32> -> vector<8x256xf32>
    %c0_39 = arith.constant 0 : index
    %c0_40 = arith.constant 0 : index
    %55 = vector.load %arg14[%c0_39, %c0_40] : memref<8x1xf32, #tpu.memory_space<vmem>>, vector<8x1xf32>
    %56 = vector.broadcast %55 : vector<8x1xf32> to vector<8x256xf32>
    %57 = arith.addf %54, %56 : vector<8x256xf32>
    %cst_41 = arith.constant 0.000000e+00 : f32
    %58 = vector.broadcast %cst_41 : f32 to vector<8x256xf32>
    %59 = arith.maximumf %57, %58 : vector<8x256xf32>
    %cst_42 = arith.constant dense<0.000000e+00> : vector<8xf32>
    %60 = vector.multi_reduction <add>, %59, %cst_42 [1] : vector<8x256xf32> to vector<8xf32>
    %61 = vector.shape_cast %60 : vector<8xf32> to vector<8x1xf32>
    %cst_43 = arith.constant 2.560000e+02 : f32
    %62 = vector.broadcast %cst_43 : f32 to vector<8x1xf32>
    %63 = arith.divf %61, %62 : vector<8x1xf32>
    %64 = tpu.concatenate %63, %3 in 0 : vector<8x1xf32>, vector<8x1xf32> -> vector<16x1xf32>
    %c0_44 = arith.constant 0 : index
    %c0_45 = arith.constant 0 : index
    %65 = vector.load %arg15[%c0_44, %c0_45] : memref<16x16xf32, #tpu.memory_space<vmem>>, vector<16x16xf32>
    %cst_46 = arith.constant dense<0.000000e+00> : vector<16x1xf32>
    %66 = tpu.matmul %65, %64, %cst_46 {dimension_numbers = #tpu.dot_dimension_numbers<[1], [0], [0], [1], [0, 0, 1, 1], [], []>} : vector<16x16xf32>, vector<16x1xf32>, vector<16x1xf32> -> vector<16x1xf32>
    %c0_47 = arith.constant 0 : index
    %c0_48 = arith.constant 0 : index
    %67 = vector.load %arg16[%c0_47, %c0_48] : memref<16x1xf32, #tpu.memory_space<vmem>>, vector<16x1xf32>
    %68 = arith.addf %66, %67 : vector<16x1xf32>
    %cst_49 = arith.constant 0.000000e+00 : f32
    %69 = vector.broadcast %cst_49 : f32 to vector<16x1xf32>
    %70 = arith.maximumf %68, %69 : vector<16x1xf32>
    %c0_50 = arith.constant 0 : index
    %c0_51 = arith.constant 0 : index
    %71 = vector.load %arg17[%c0_50, %c0_51] : memref<16x16xf32, #tpu.memory_space<vmem>>, vector<16x16xf32>
    %cst_52 = arith.constant dense<0.000000e+00> : vector<16x1xf32>
    %72 = tpu.matmul %71, %70, %cst_52 {dimension_numbers = #tpu.dot_dimension_numbers<[1], [0], [0], [1], [0, 0, 1, 1], [], []>} : vector<16x16xf32>, vector<16x1xf32>, vector<16x1xf32> -> vector<16x1xf32>
    %c0_53 = arith.constant 0 : index
    %c0_54 = arith.constant 0 : index
    %73 = vector.load %arg18[%c0_53, %c0_54] : memref<16x1xf32, #tpu.memory_space<vmem>>, vector<16x1xf32>
    %74 = arith.addf %72, %73 : vector<16x1xf32>
    %75 = vector.extract_strided_slice %74 {offsets = [0, 0], sizes = [8, 1], strides = [1, 1]} : vector<16x1xf32> to vector<8x1xf32>
    %76 = vector.extract_strided_slice %74 {offsets = [8, 0], sizes = [8, 1], strides = [1, 1]} : vector<16x1xf32> to vector<8x1xf32>
    %77 = vector.broadcast %75 : vector<8x1xf32> to vector<8x256xf32>
    %78 = arith.mulf %59, %77 : vector<8x256xf32>
    %79 = vector.broadcast %76 : vector<8x1xf32> to vector<8x256xf32>
    %80 = arith.addf %78, %79 : vector<8x256xf32>
    %c0_55 = arith.constant 0 : index
    %c0_56 = arith.constant 0 : index
    %81 = vector.load %arg19[%c0_55, %c0_56] : memref<8x8xf32, #tpu.memory_space<vmem>>, vector<8x8xf32>
    %cst_57 = arith.constant dense<0.000000e+00> : vector<8x256xf32>
    %82 = tpu.matmul %81, %80, %cst_57 {dimension_numbers = #tpu.dot_dimension_numbers<[1], [0], [0], [1], [0, 0, 1, 1], [], []>} : vector<8x8xf32>, vector<8x256xf32>, vector<8x256xf32> -> vector<8x256xf32>
    %c0_58 = arith.constant 0 : index
    %c0_59 = arith.constant 0 : index
    %83 = vector.load %arg20[%c0_58, %c0_59] : memref<8x1xf32, #tpu.memory_space<vmem>>, vector<8x1xf32>
    %84 = vector.broadcast %83 : vector<8x1xf32> to vector<8x256xf32>
    %85 = arith.addf %82, %84 : vector<8x256xf32>
    %cst_60 = arith.constant 0.000000e+00 : f32
    %86 = vector.broadcast %cst_60 : f32 to vector<8x256xf32>
    %87 = arith.maximumf %85, %86 : vector<8x256xf32>
    %c0_61 = arith.constant 0 : index
    %c0_62 = arith.constant 0 : index
    %c0_63 = arith.constant 0 : index
    %88 = vector.load %arg21[%c0_61, %c0_62, %c0_63] : memref<1x8x256xf32, #tpu.memory_space<vmem>>, vector<1x8x256xf32>
    %89 = vector.shape_cast %88 : vector<1x8x256xf32> to vector<8x256xf32>
    %90 = vector.shape_cast %87 : vector<8x256xf32> to vector<1x8x256xf32>
    tpu.vector_store %arg21[%c0_61, %c0_62, %c0_63], %90 {strides = array<i32>} : memref<1x8x256xf32, #tpu.memory_space<vmem>>, vector<1x8x256xf32>,
    return
  }
  func.func @transform_0(%arg0: i32) -> (i32, i32, i32) {
    %c0_i32 = arith.constant 0 : i32
    %c0_i32_0 = arith.constant 0 : i32
    %c0_i32_1 = arith.constant 0 : i32
    return %arg0, %c0_i32, %c0_i32_0 : i32, i32, i32
  }
  func.func @transform_1(%arg0: i32) -> (i32, i32, i32) {
    %c0_i32 = arith.constant 0 : i32
    %c0_i32_0 = arith.constant 0 : i32
    %c0_i32_1 = arith.constant 0 : i32
    return %arg0, %c0_i32, %c0_i32_0 : i32, i32, i32
  }
  func.func @transform_2(%arg0: i32) -> (i32, i32) {
    %c0_i32 = arith.constant 0 : i32
    %c0_i32_0 = arith.constant 0 : i32
    %c0_i32_1 = arith.constant 0 : i32
    return %c0_i32, %c0_i32_0 : i32, i32
  }
  func.func @transform_3(%arg0: i32) -> (i32, i32) {
    %c0_i32 = arith.constant 0 : i32
    %c0_i32_0 = arith.constant 0 : i32
    %c0_i32_1 = arith.constant 0 : i32
    return %c0_i32, %c0_i32_0 : i32, i32
  }
  func.func @transform_4(%arg0: i32) -> (i32, i32) {
    %c0_i32 = arith.constant 0 : i32
    %c0_i32_0 = arith.constant 0 : i32
    %c0_i32_1 = arith.constant 0 : i32
    return %c0_i32, %c0_i32_0 : i32, i32
  }
  func.func @transform_5(%arg0: i32) -> (i32, i32) {
    %c0_i32 = arith.constant 0 : i32
    %c0_i32_0 = arith.constant 0 : i32
    %c0_i32_1 = arith.constant 0 : i32
    return %c0_i32, %c0_i32_0 : i32, i32
  }
  func.func @transform_6(%arg0: i32) -> (i32, i32) {
    %c0_i32 = arith.constant 0 : i32
    %c0_i32_0 = arith.constant 0 : i32
    %c0_i32_1 = arith.constant 0 : i32
    return %c0_i32, %c0_i32_0 : i32, i32
  }
  func.func @transform_7(%arg0: i32) -> (i32, i32) {
    %c0_i32 = arith.constant 0 : i32
    %c0_i32_0 = arith.constant 0 : i32
    %c0_i32_1 = arith.constant 0 : i32
    return %c0_i32, %c0_i32_0 : i32, i32
  }
  func.func @transform_8(%arg0: i32) -> (i32, i32) {
    %c0_i32 = arith.constant 0 : i32
    %c0_i32_0 = arith.constant 0 : i32
    %c0_i32_1 = arith.constant 0 : i32
    return %c0_i32, %c0_i32_0 : i32, i32
  }
  func.func @transform_9(%arg0: i32) -> (i32, i32) {
    %c0_i32 = arith.constant 0 : i32
    %c0_i32_0 = arith.constant 0 : i32
    %c0_i32_1 = arith.constant 0 : i32
    return %c0_i32, %c0_i32_0 : i32, i32
  }
  func.func @transform_10(%arg0: i32) -> (i32, i32) {
    %c0_i32 = arith.constant 0 : i32
    %c0_i32_0 = arith.constant 0 : i32
    %c0_i32_1 = arith.constant 0 : i32
    return %c0_i32, %c0_i32_0 : i32, i32
  }
  func.func @transform_11(%arg0: i32) -> (i32, i32) {
    %c0_i32 = arith.constant 0 : i32
    %c0_i32_0 = arith.constant 0 : i32
    %c0_i32_1 = arith.constant 0 : i32
    return %c0_i32, %c0_i32_0 : i32, i32
  }
  func.func @transform_12(%arg0: i32) -> (i32, i32) {
    %c0_i32 = arith.constant 0 : i32
    %c0_i32_0 = arith.constant 0 : i32
    %c0_i32_1 = arith.constant 0 : i32
    return %c0_i32, %c0_i32_0 : i32, i32
  }
  func.func @transform_13(%arg0: i32) -> (i32, i32) {
    %c0_i32 = arith.constant 0 : i32
    %c0_i32_0 = arith.constant 0 : i32
    %c0_i32_1 = arith.constant 0 : i32
    return %c0_i32, %c0_i32_0 : i32, i32
  }
  func.func @transform_14(%arg0: i32) -> (i32, i32) {
    %c0_i32 = arith.constant 0 : i32
    %c0_i32_0 = arith.constant 0 : i32
    %c0_i32_1 = arith.constant 0 : i32
    return %c0_i32, %c0_i32_0 : i32, i32
  }
  func.func @transform_15(%arg0: i32) -> (i32, i32) {
    %c0_i32 = arith.constant 0 : i32
    %c0_i32_0 = arith.constant 0 : i32
    %c0_i32_1 = arith.constant 0 : i32
    return %c0_i32, %c0_i32_0 : i32, i32
  }
  func.func @transform_16(%arg0: i32) -> (i32, i32) {
    %c0_i32 = arith.constant 0 : i32
    %c0_i32_0 = arith.constant 0 : i32
    %c0_i32_1 = arith.constant 0 : i32
    return %c0_i32, %c0_i32_0 : i32, i32
  }
  func.func @transform_17(%arg0: i32) -> (i32, i32) {
    %c0_i32 = arith.constant 0 : i32
    %c0_i32_0 = arith.constant 0 : i32
    %c0_i32_1 = arith.constant 0 : i32
    return %c0_i32, %c0_i32_0 : i32, i32
  }
  func.func @transform_18(%arg0: i32) -> (i32, i32) {
    %c0_i32 = arith.constant 0 : i32
    %c0_i32_0 = arith.constant 0 : i32
    %c0_i32_1 = arith.constant 0 : i32
    return %c0_i32, %c0_i32_0 : i32, i32
  }
  func.func @transform_19(%arg0: i32) -> (i32, i32) {
    %c0_i32 = arith.constant 0 : i32
    %c0_i32_0 = arith.constant 0 : i32
    %c0_i32_1 = arith.constant 0 : i32
    return %c0_i32, %c0_i32_0 : i32, i32
  }
  func.func @transform_20(%arg0: i32) -> (i32, i32, i32) {
    %c0_i32 = arith.constant 0 : i32
    %c0_i32_0 = arith.constant 0 : i32
    %c0_i32_1 = arith.constant 0 : i32
    return %arg0, %c0_i32, %c0_i32_0 : i32, i32, i32
  }
}

</mosaic_0001>

<llo_original>
// kernel: sequential_forward.1
$region0: #{sequential_forward.1}
  #allocation0 [shape = 'u32[]', space=smem, size = 0x4, offset = 0x4, fixed_abs, tag = 'smem constant byte address 0x4 - core index']
  #allocation1 [shape = 'u32[144,128]{1,0:T(1,128)}', space=vmem, size = 0x12000, scoped, tag = 'internal scratch']
  %s0 = inlined_call_operand.vmem [shape: f32[2,8,256], index: 0, kind: input, shape index: {}]
  %s1 = inlined_call_operand.vmem [shape: f32[2,8,1], index: 1, kind: input, shape index: {}]
  %s2 = inlined_call_operand.vmem [shape: f32[16,16], index: 2, kind: input, shape index: {}]
  %s3 = inlined_call_operand.vmem [shape: f32[16,1], index: 3, kind: input, shape index: {}]
  %s4 = inlined_call_operand.vmem [shape: f32[16,16], index: 4, kind: input, shape index: {}]
  %s5 = inlined_call_operand.vmem [shape: f32[16,1], index: 5, kind: input, shape index: {}]
  %s6 = inlined_call_operand.vmem [shape: f32[8,8], index: 6, kind: input, shape index: {}]
  %s7 = inlined_call_operand.vmem [shape: f32[8,1], index: 7, kind: input, shape index: {}]
  %s8 = inlined_call_operand.vmem [shape: f32[16,16], index: 8, kind: input, shape index: {}]
  %s9 = inlined_call_operand.vmem [shape: f32[16,1], index: 9, kind: input, shape index: {}]
  %s10 = inlined_call_operand.vmem [shape: f32[16,16], index: 10, kind: input, shape index: {}]
  %s11 = inlined_call_operand.vmem [shape: f32[16,1], index: 11, kind: input, shape index: {}]
  %s12 = inlined_call_operand.vmem [shape: f32[8,8], index: 12, kind: input, shape index: {}]
  %s13 = inlined_call_operand.vmem [shape: f32[8,1], index: 13, kind: input, shape index: {}]
  %s14 = inlined_call_operand.vmem [shape: f32[16,16], index: 14, kind: input, shape index: {}]
  %s15 = inlined_call_operand.vmem [shape: f32[16,1], index: 15, kind: input, shape index: {}]
  %s16 = inlined_call_operand.vmem [shape: f32[16,16], index: 16, kind: input, shape index: {}]
  %s17 = inlined_call_operand.vmem [shape: f32[16,1], index: 17, kind: input, shape index: {}]
  %s18 = inlined_call_operand.vmem [shape: f32[8,8], index: 18, kind: input, shape index: {}]
  %s19 = inlined_call_operand.vmem [shape: f32[8,1], index: 19, kind: input, shape index: {}]
  %s20 = inlined_call_operand.vmem [shape: f32[2,8,256], index: 20, kind: output, shape index: {}]
  %s21 = sld [smem:[#allocation0]]
  $region113: #{sequential_forward.1} parent=0
    _
  %s23 = ssub.s32 1, %s21
  %s24 = scalar_select 0, %s23, %s21
  loop: start=0, step=1, limit=4
  $region2: #{sequential_forward.1} parent=0 // loop_pre_header
    _
  $region3: #{sequential_forward.1} parent=0 // loop_header
    %s26 = sphi 0, %s30
    %p27 = scmp.ge.s32.totalorder %s26, 4
    %s36 = sphi 0, %s38
    %s39 = sphi 0, %s36
    %s40 = sphi 0, %s39
    %s56 = sphi 0, %s40
    %s62 = sphi 0, %s64
    %s65 = sphi 0, %s62
    %s66 = sphi 0, %s65
    %s82 = sphi 0, %s66
    %s86 = sphi 0, %s86
    %s88 = sphi 0, %s86
    %s89 = sphi 0, %s88
    %s103 = sphi 0, %s89
    %s107 = sphi 0, %s107
    %s109 = sphi 0, %s107
    %s110 = sphi 0, %s109
    %s124 = sphi 0, %s110
    %s128 = sphi 0, %s128
    %s130 = sphi 0, %s128
    %s131 = sphi 0, %s130
    %s145 = sphi 0, %s131
    %s149 = sphi 0, %s149
    %s151 = sphi 0, %s149
    %s152 = sphi 0, %s151
    %s166 = sphi 0, %s152
    %s170 = sphi 0, %s170
    %s172 = sphi 0, %s170
    %s173 = sphi 0, %s172
    %s187 = sphi 0, %s173
    %s191 = sphi 0, %s191
    %s193 = sphi 0, %s191
    %s194 = sphi 0, %s193
    %s208 = sphi 0, %s194
    %s212 = sphi 0, %s212
    %s214 = sphi 0, %s212
    %s215 = sphi 0, %s214
    %s229 = sphi 0, %s215
    %s233 = sphi 0, %s233
    %s235 = sphi 0, %s233
    %s236 = sphi 0, %s235
    %s250 = sphi 0, %s236
    %s254 = sphi 0, %s254
    %s256 = sphi 0, %s254
    %s257 = sphi 0, %s256
    %s271 = sphi 0, %s257
    %s275 = sphi 0, %s275
    %s277 = sphi 0, %s275
    %s278 = sphi 0, %s277
    %s292 = sphi 0, %s278
    %s296 = sphi 0, %s296
    %s298 = sphi 0, %s296
    %s299 = sphi 0, %s298
    %s313 = sphi 0, %s299
    %s317 = sphi 0, %s317
    %s319 = sphi 0, %s317
    %s320 = sphi 0, %s319
    %s334 = sphi 0, %s320
    %s338 = sphi 0, %s338
    %s340 = sphi 0, %s338
    %s341 = sphi 0, %s340
    %s355 = sphi 0, %s341
    %s359 = sphi 0, %s359
    %s361 = sphi 0, %s359
    %s362 = sphi 0, %s361
    %s376 = sphi 0, %s362
    %s380 = sphi 0, %s380
    %s382 = sphi 0, %s380
    %s383 = sphi 0, %s382
    %s397 = sphi 0, %s383
    %s401 = sphi 0, %s401
    %s403 = sphi 0, %s401
    %s404 = sphi 0, %s403
    %s418 = sphi 0, %s404
    %s422 = sphi 0, %s422
    %s424 = sphi 0, %s422
    %s425 = sphi 0, %s424
    %s439 = sphi 0, %s425
    %s443 = sphi 0, %s443
    %s445 = sphi 0, %s443
    %s446 = sphi 0, %s445
    %s460 = sphi 0, %s446
    %s466 = sphi 0, %s468
    %s469 = sphi 0, %s466
    %s470 = sphi 0, %s469
    %s486 = sphi 0, %s470
  $region4: #{sequential_forward.1} parent=0 // loop_header_branch
    %29 = sbr.rel (%p27) target = $region8
  $region5: #{sequential_forward.1} parent=0 // loop_body
    %s31 = ssub.s32 %s26, 1
    %s32 = ssub.s32 %s26, 2
    %s33 = sadd.s32 %s26, 1
    %s34 = ssub.s32 %s26, %s33
    %p35 = scmp.eq.s32.totalorder %s34, 0
    %s37 = sadd.s32 %s36, 1
    %s38 = scalar_select %p35, %s36, %s37
    %p41 = pneg %p35
    %p42 = scmp.eq.s32.totalorder %s26, 1
    %p43 = por %p41, %p42
    %p44 = scmp.ne.s32.totalorder %s36, %s39
    %p45 = scmp.eq.s32.totalorder %s26, 0
    %p46 = por %p44, %p45
    %p47 = scmp.ne.s32.totalorder %s36, %s39
    %p48 = scmp.eq.s32.totalorder %s31, 1
    %p49 = por %p47, %p48
    %p50 = scmp.ne.s32.totalorder %s39, %s40
    %p51 = scmp.eq.s32.totalorder %s31, 0
    %p52 = por %p50, %p51
    %p53 = scmp.ne.s32.totalorder %s39, %s40
    %p54 = scmp.eq.s32.totalorder %s32, 1
    %p55 = por %p53, %p54
    %p57 = scmp.ne.s32.totalorder %s40, %s56
    %p58 = scmp.eq.s32.totalorder %s32, 0
    %p59 = por %p57, %p58
    %s60 = ssub.s32 %s26, %s33
    %p61 = scmp.eq.s32.totalorder %s60, 0
    %s63 = sadd.s32 %s62, 1
    %s64 = scalar_select %p61, %s62, %s63
    %p67 = pneg %p61
    %p68 = scmp.eq.s32.totalorder %s26, 1
    %p69 = por %p67, %p68
    %p70 = scmp.ne.s32.totalorder %s62, %s65
    %p71 = scmp.eq.s32.totalorder %s26, 0
    %p72 = por %p70, %p71
    %p73 = scmp.ne.s32.totalorder %s62, %s65
    %p74 = scmp.eq.s32.totalorder %s31, 1
    %p75 = por %p73, %p74
    %p76 = scmp.ne.s32.totalorder %s65, %s66
    %p77 = scmp.eq.s32.totalorder %s31, 0
    %p78 = por %p76, %p77
    %p79 = scmp.ne.s32.totalorder %s65, %s66
    %p80 = scmp.eq.s32.totalorder %s32, 1
    %p81 = por %p79, %p80
    %p83 = scmp.ne.s32.totalorder %s66, %s82
    %p84 = scmp.eq.s32.totalorder %s32, 0
    %p85 = por %p83, %p84
    %s87 = sadd.s32 %s86, 1
    %p90 = scmp.eq.s32.totalorder %s26, 1
    %p91 = scmp.ne.s32.totalorder %s86, %s88
    %p92 = scmp.eq.s32.totalorder %s26, 0
    %p93 = por %p91, %p92
    %p94 = scmp.ne.s32.totalorder %s86, %s88
    %p95 = scmp.eq.s32.totalorder %s31, 1
    %p96 = por %p94, %p95
    %p97 = scmp.ne.s32.totalorder %s88, %s89
    %p98 = scmp.eq.s32.totalorder %s31, 0
    %p99 = por %p97, %p98
    %p100 = scmp.ne.s32.totalorder %s88, %s89
    %p101 = scmp.eq.s32.totalorder %s32, 1
    %p102 = por %p100, %p101
    %p104 = scmp.ne.s32.totalorder %s89, %s103
    %p105 = scmp.eq.s32.totalorder %s32, 0
    %p106 = por %p104, %p105
    %s108 = sadd.s32 %s107, 1
    %p111 = scmp.eq.s32.totalorder %s26, 1
    %p112 = scmp.ne.s32.totalorder %s107, %s109
    %p113 = scmp.eq.s32.totalorder %s26, 0
    %p114 = por %p112, %p113
    %p115 = scmp.ne.s32.totalorder %s107, %s109
    %p116 = scmp.eq.s32.totalorder %s31, 1
    %p117 = por %p115, %p116
    %p118 = scmp.ne.s32.totalorder %s109, %s110
    %p119 = scmp.eq.s32.totalorder %s31, 0
    %p120 = por %p118, %p119
    %p121 = scmp.ne.s32.totalorder %s109, %s110
    %p122 = scmp.eq.s32.totalorder %s32, 1
    %p123 = por %p121, %p122
    %p125 = scmp.ne.s32.totalorder %s110, %s124
    %p126 = scmp.eq.s32.totalorder %s32, 0
    %p127 = por %p125, %p126
    %s129 = sadd.s32 %s128, 1
    %p132 = scmp.eq.s32.totalorder %s26, 1
    %p133 = scmp.ne.s32.totalorder %s128, %s130
    %p134 = scmp.eq.s32.totalorder %s26, 0
    %p135 = por %p133, %p134
    %p136 = scmp.ne.s32.totalorder %s128, %s130
    %p137 = scmp.eq.s32.totalorder %s31, 1
    %p138 = por %p136, %p137
    %p139 = scmp.ne.s32.totalorder %s130, %s131
    %p140 = scmp.eq.s32.totalorder %s31, 0
    %p141 = por %p139, %p140
    %p142 = scmp.ne.s32.totalorder %s130, %s131
    %p143 = scmp.eq.s32.totalorder %s32, 1
    %p144 = por %p142, %p143
    %p146 = scmp.ne.s32.totalorder %s131, %s145
    %p147 = scmp.eq.s32.totalorder %s32, 0
    %p148 = por %p146, %p147
    %s150 = sadd.s32 %s149, 1
    %p153 = scmp.eq.s32.totalorder %s26, 1
    %p154 = scmp.ne.s32.totalorder %s149, %s151
    %p155 = scmp.eq.s32.totalorder %s26, 0
    %p156 = por %p154, %p155
    %p157 = scmp.ne.s32.totalorder %s149, %s151
    %p158 = scmp.eq.s32.totalorder %s31, 1
    %p159 = por %p157, %p158
    %p160 = scmp.ne.s32.totalorder %s151, %s152
    %p161 = scmp.eq.s32.totalorder %s31, 0
    %p162 = por %p160, %p161
    %p163 = scmp.ne.s32.totalorder %s151, %s152
    %p164 = scmp.eq.s32.totalorder %s32, 1
    %p165 = por %p163, %p164
    %p167 = scmp.ne.s32.totalorder %s152, %s166
    %p168 = scmp.eq.s32.totalorder %s32, 0
    %p169 = por %p167, %p168
    %s171 = sadd.s32 %s170, 1
    %p174 = scmp.eq.s32.totalorder %s26, 1
    %p175 = scmp.ne.s32.totalorder %s170, %s172
    %p176 = scmp.eq.s32.totalorder %s26, 0
    %p177 = por %p175, %p176
    %p178 = scmp.ne.s32.totalorder %s170, %s172
    %p179 = scmp.eq.s32.totalorder %s31, 1
    %p180 = por %p178, %p179
    %p181 = scmp.ne.s32.totalorder %s172, %s173
    %p182 = scmp.eq.s32.totalorder %s31, 0
    %p183 = por %p181, %p182
    %p184 = scmp.ne.s32.totalorder %s172, %s173
    %p185 = scmp.eq.s32.totalorder %s32, 1
    %p186 = por %p184, %p185
    %p188 = scmp.ne.s32.totalorder %s173, %s187
    %p189 = scmp.eq.s32.totalorder %s32, 0
    %p190 = por %p188, %p189
    %s192 = sadd.s32 %s191, 1
    %p195 = scmp.eq.s32.totalorder %s26, 1
    %p196 = scmp.ne.s32.totalorder %s191, %s193
    %p197 = scmp.eq.s32.totalorder %s26, 0
    %p198 = por %p196, %p197
    %p199 = scmp.ne.s32.totalorder %s191, %s193
    %p200 = scmp.eq.s32.totalorder %s31, 1
    %p201 = por %p199, %p200
    %p202 = scmp.ne.s32.totalorder %s193, %s194
    %p203 = scmp.eq.s32.totalorder %s31, 0
    %p204 = por %p202, %p203
    %p205 = scmp.ne.s32.totalorder %s193, %s194
    %p206 = scmp.eq.s32.totalorder %s32, 1
    %p207 = por %p205, %p206
    %p209 = scmp.ne.s32.totalorder %s194, %s208
    %p210 = scmp.eq.s32.totalorder %s32, 0
    %p211 = por %p209, %p210
    %s213 = sadd.s32 %s212, 1
    %p216 = scmp.eq.s32.totalorder %s26, 1
    %p217 = scmp.ne.s32.totalorder %s212, %s214
    %p218 = scmp.eq.s32.totalorder %s26, 0
    %p219 = por %p217, %p218
    %p220 = scmp.ne.s32.totalorder %s212, %s214
    %p221 = scmp.eq.s32.totalorder %s31, 1
    %p222 = por %p220, %p221
    %p223 = scmp.ne.s32.totalorder %s214, %s215
    %p224 = scmp.eq.s32.totalorder %s31, 0
    %p225 = por %p223, %p224
    %p226 = scmp.ne.s32.totalorder %s214, %s215
    %p227 = scmp.eq.s32.totalorder %s32, 1
    %p228 = por %p226, %p227
    %p230 = scmp.ne.s32.totalorder %s215, %s229
    %p231 = scmp.eq.s32.totalorder %s32, 0
    %p232 = por %p230, %p231
    %s234 = sadd.s32 %s233, 1
    %p237 = scmp.eq.s32.totalorder %s26, 1
    %p238 = scmp.ne.s32.totalorder %s233, %s235
    %p239 = scmp.eq.s32.totalorder %s26, 0
    %p240 = por %p238, %p239
    %p241 = scmp.ne.s32.totalorder %s233, %s235
    %p242 = scmp.eq.s32.totalorder %s31, 1
    %p243 = por %p241, %p242
    %p244 = scmp.ne.s32.totalorder %s235, %s236
    %p245 = scmp.eq.s32.totalorder %s31, 0
    %p246 = por %p244, %p245
    %p247 = scmp.ne.s32.totalorder %s235, %s236
    %p248 = scmp.eq.s32.totalorder %s32, 1
    %p249 = por %p247, %p248
    %p251 = scmp.ne.s32.totalorder %s236, %s250
    %p252 = scmp.eq.s32.totalorder %s32, 0
    %p253 = por %p251, %p252
    %s255 = sadd.s32 %s254, 1
    %p258 = scmp.eq.s32.totalorder %s26, 1
    %p259 = scmp.ne.s32.totalorder %s254, %s256
    %p260 = scmp.eq.s32.totalorder %s26, 0
    %p261 = por %p259, %p260
    %p262 = scmp.ne.s32.totalorder %s254, %s256
    %p263 = scmp.eq.s32.totalorder %s31, 1
    %p264 = por %p262, %p263
    %p265 = scmp.ne.s32.totalorder %s256, %s257
    %p266 = scmp.eq.s32.totalorder %s31, 0
    %p267 = por %p265, %p266
    %p268 = scmp.ne.s32.totalorder %s256, %s257
    %p269 = scmp.eq.s32.totalorder %s32, 1
    %p270 = por %p268, %p269
    %p272 = scmp.ne.s32.totalorder %s257, %s271
    %p273 = scmp.eq.s32.totalorder %s32, 0
    %p274 = por %p272, %p273
    %s276 = sadd.s32 %s275, 1
    %p279 = scmp.eq.s32.totalorder %s26, 1
    %p280 = scmp.ne.s32.totalorder %s275, %s277
    %p281 = scmp.eq.s32.totalorder %s26, 0
    %p282 = por %p280, %p281
    %p283 = scmp.ne.s32.totalorder %s275, %s277
    %p284 = scmp.eq.s32.totalorder %s31, 1
    %p285 = por %p283, %p284
    %p286 = scmp.ne.s32.totalorder %s277, %s278
    %p287 = scmp.eq.s32.totalorder %s31, 0
    %p288 = por %p286, %p287
    %p289 = scmp.ne.s32.totalorder %s277, %s278
    %p290 = scmp.eq.s32.totalorder %s32, 1
    %p291 = por %p289, %p290
    %p293 = scmp.ne.s32.totalorder %s278, %s292
    %p294 = scmp.eq.s32.totalorder %s32, 0
    %p295 = por %p293, %p294
    %s297 = sadd.s32 %s296, 1
    %p300 = scmp.eq.s32.totalorder %s26, 1
    %p301 = scmp.ne.s32.totalorder %s296, %s298
    %p302 = scmp.eq.s32.totalorder %s26, 0
    %p303 = por %p301, %p302
    %p304 = scmp.ne.s32.totalorder %s296, %s298
    %p305 = scmp.eq.s32.totalorder %s31, 1
    %p306 = por %p304, %p305
    %p307 = scmp.ne.s32.totalorder %s298, %s299
    %p308 = scmp.eq.s32.totalorder %s31, 0
    %p309 = por %p307, %p308
    %p310 = scmp.ne.s32.totalorder %s298, %s299
    %p311 = scmp.eq.s32.totalorder %s32, 1
    %p312 = por %p310, %p311
    %p314 = scmp.ne.s32.totalorder %s299, %s313
    %p315 = scmp.eq.s32.totalorder %s32, 0
    %p316 = por %p314, %p315
    %s318 = sadd.s32 %s317, 1
    %p321 = scmp.eq.s32.totalorder %s26, 1
    %p322 = scmp.ne.s32.totalorder %s317, %s319
    %p323 = scmp.eq.s32.totalorder %s26, 0
    %p324 = por %p322, %p323
    %p325 = scmp.ne.s32.totalorder %s317, %s319
    %p326 = scmp.eq.s32.totalorder %s31, 1
    %p327 = por %p325, %p326
    %p328 = scmp.ne.s32.totalorder %s319, %s320
    %p329 = scmp.eq.s32.totalorder %s31, 0
    %p330 = por %p328, %p329
    %p331 = scmp.ne.s32.totalorder %s319, %s320
    %p332 = scmp.eq.s32.totalorder %s32, 1
    %p333 = por %p331, %p332
    %p335 = scmp.ne.s32.totalorder %s320, %s334
    %p336 = scmp.eq.s32.totalorder %s32, 0
    %p337 = por %p335, %p336
    %s339 = sadd.s32 %s338, 1
    %p342 = scmp.eq.s32.totalorder %s26, 1
    %p343 = scmp.ne.s32.totalorder %s338, %s340
    %p344 = scmp.eq.s32.totalorder %s26, 0
    %p345 = por %p343, %p344
    %p346 = scmp.ne.s32.totalorder %s338, %s340
    %p347 = scmp.eq.s32.totalorder %s31, 1
    %p348 = por %p346, %p347
    %p349 = scmp.ne.s32.totalorder %s340, %s341
    %p350 = scmp.eq.s32.totalorder %s31, 0
    %p351 = por %p349, %p350
    %p352 = scmp.ne.s32.totalorder %s340, %s341
    %p353 = scmp.eq.s32.totalorder %s32, 1
    %p354 = por %p352, %p353
    %p356 = scmp.ne.s32.totalorder %s341, %s355
    %p357 = scmp.eq.s32.totalorder %s32, 0
    %p358 = por %p356, %p357
    %s360 = sadd.s32 %s359, 1
    %p363 = scmp.eq.s32.totalorder %s26, 1
    %p364 = scmp.ne.s32.totalorder %s359, %s361
    %p365 = scmp.eq.s32.totalorder %s26, 0
    %p366 = por %p364, %p365
    %p367 = scmp.ne.s32.totalorder %s359, %s361
    %p368 = scmp.eq.s32.totalorder %s31, 1
    %p369 = por %p367, %p368
    %p370 = scmp.ne.s32.totalorder %s361, %s362
    %p371 = scmp.eq.s32.totalorder %s31, 0
    %p372 = por %p370, %p371
    %p373 = scmp.ne.s32.totalorder %s361, %s362
    %p374 = scmp.eq.s32.totalorder %s32, 1
    %p375 = por %p373, %p374
    %p377 = scmp.ne.s32.totalorder %s362, %s376
    %p378 = scmp.eq.s32.totalorder %s32, 0
    %p379 = por %p377, %p378
    %s381 = sadd.s32 %s380, 1
    %p384 = scmp.eq.s32.totalorder %s26, 1
    %p385 = scmp.ne.s32.totalorder %s380, %s382
    %p386 = scmp.eq.s32.totalorder %s26, 0
    %p387 = por %p385, %p386
    %p388 = scmp.ne.s32.totalorder %s380, %s382
    %p389 = scmp.eq.s32.totalorder %s31, 1
    %p390 = por %p388, %p389
    %p391 = scmp.ne.s32.totalorder %s382, %s383
    %p392 = scmp.eq.s32.totalorder %s31, 0
    %p393 = por %p391, %p392
    %p394 = scmp.ne.s32.totalorder %s382, %s383
    %p395 = scmp.eq.s32.totalorder %s32, 1
    %p396 = por %p394, %p395
    %p398 = scmp.ne.s32.totalorder %s383, %s397
    %p399 = scmp.eq.s32.totalorder %s32, 0
    %p400 = por %p398, %p399
    %s402 = sadd.s32 %s401, 1
    %p405 = scmp.eq.s32.totalorder %s26, 1
    %p406 = scmp.ne.s32.totalorder %s401, %s403
    %p407 = scmp.eq.s32.totalorder %s26, 0
    %p408 = por %p406, %p407
    %p409 = scmp.ne.s32.totalorder %s401, %s403
    %p410 = scmp.eq.s32.totalorder %s31, 1
    %p411 = por %p409, %p410
    %p412 = scmp.ne.s32.totalorder %s403, %s404
    %p413 = scmp.eq.s32.totalorder %s31, 0
    %p414 = por %p412, %p413
    %p415 = scmp.ne.s32.totalorder %s403, %s404
    %p416 = scmp.eq.s32.totalorder %s32, 1
    %p417 = por %p415, %p416
    %p419 = scmp.ne.s32.totalorder %s404, %s418
    %p420 = scmp.eq.s32.totalorder %s32, 0
    %p421 = por %p419, %p420
    %s423 = sadd.s32 %s422, 1
    %p426 = scmp.eq.s32.totalorder %s26, 1
    %p427 = scmp.ne.s32.totalorder %s422, %s424
    %p428 = scmp.eq.s32.totalorder %s26, 0
    %p429 = por %p427, %p428
    %p430 = scmp.ne.s32.totalorder %s422, %s424
    %p431 = scmp.eq.s32.totalorder %s31, 1
    %p432 = por %p430, %p431
    %p433 = scmp.ne.s32.totalorder %s424, %s425
    %p434 = scmp.eq.s32.totalorder %s31, 0
    %p435 = por %p433, %p434
    %p436 = scmp.ne.s32.totalorder %s424, %s425
    %p437 = scmp.eq.s32.totalorder %s32, 1
    %p438 = por %p436, %p437
    %p440 = scmp.ne.s32.totalorder %s425, %s439
    %p441 = scmp.eq.s32.totalorder %s32, 0
    %p442 = por %p440, %p441
    %s444 = sadd.s32 %s443, 1
    %p447 = scmp.eq.s32.totalorder %s26, 1
    %p448 = scmp.ne.s32.totalorder %s443, %s445
    %p449 = scmp.eq.s32.totalorder %s26, 0
    %p450 = por %p448, %p449
    %p451 = scmp.ne.s32.totalorder %s443, %s445
    %p452 = scmp.eq.s32.totalorder %s31, 1
    %p453 = por %p451, %p452
    %p454 = scmp.ne.s32.totalorder %s445, %s446
    %p455 = scmp.eq.s32.totalorder %s31, 0
    %p456 = por %p454, %p455
    %p457 = scmp.ne.s32.totalorder %s445, %s446
    %p458 = scmp.eq.s32.totalorder %s32, 1
    %p459 = por %p457, %p458
    %p461 = scmp.ne.s32.totalorder %s446, %s460
    %p462 = scmp.eq.s32.totalorder %s32, 0
    %p463 = por %p461, %p462
    %s464 = ssub.s32 %s26, %s33
    %p465 = scmp.eq.s32.totalorder %s464, 0
    %s467 = sadd.s32 %s466, 1
    %s468 = scalar_select %p465, %s466, %s467
    %p471 = pneg %p465
    %p472 = scmp.eq.s32.totalorder %s26, 1
    %p473 = por %p471, %p472
    %p474 = scmp.ne.s32.totalorder %s466, %s469
    %p475 = scmp.eq.s32.totalorder %s26, 0
    %p476 = por %p474, %p475
    %p477 = scmp.ne.s32.totalorder %s466, %s469
    %p478 = scmp.eq.s32.totalorder %s31, 1
    %p479 = por %p477, %p478
    %p480 = scmp.ne.s32.totalorder %s469, %s470
    %p481 = scmp.eq.s32.totalorder %s31, 0
    %p482 = por %p480, %p481
    %p483 = scmp.ne.s32.totalorder %s469, %s470
    %p484 = scmp.eq.s32.totalorder %s32, 1
    %p485 = por %p483, %p484
    %p487 = scmp.ne.s32.totalorder %s470, %s486
    %p488 = scmp.eq.s32.totalorder %s32, 0
    %p489 = por %p487, %p488
    %p490 = scmp.le.s32.totalorder 1, %s26
    %p491 = scmp.lt.s32.totalorder %s26, 3
    %p492 = pnand %p490, %p491
    %p493 = pneg %p492
    // Predicated region
    $region9: #{sequential_forward.1} parent=5 // pred_check
      _
    $region10: #{sequential_forward.1} parent=5 // pred_check_branch
      %495 = sbr.rel (%p492) target = $region12
    $region11: #{sequential_forward.1} parent=5 // pred_region
      %s496 = ssub.s32 %s26, 1
      // Predicated region
      $region13: #{sequential_forward.1} parent=11 // pred_check
        %p497 = pneg %p99
      $region14: #{sequential_forward.1} parent=11 // pred_check_branch
        %499 = sbr.rel (%p497) target = $region16
      $region15: #{sequential_forward.1} parent=11 // pred_region
        _
      $region16: #{sequential_forward.1} parent=11 // pred_fallthru
        _
      // Predicated region
      $region17: #{sequential_forward.1} parent=11 // pred_check
        %p500 = pneg %p120
      $region18: #{sequential_forward.1} parent=11 // pred_check_branch
        %502 = sbr.rel (%p500) target = $region20
      $region19: #{sequential_forward.1} parent=11 // pred_region
        _
      $region20: #{sequential_forward.1} parent=11 // pred_fallthru
        _
      // Predicated region
      $region21: #{sequential_forward.1} parent=11 // pred_check
        %p503 = pneg %p141
      $region22: #{sequential_forward.1} parent=11 // pred_check_branch
        %505 = sbr.rel (%p503) target = $region24
      $region23: #{sequential_forward.1} parent=11 // pred_region
        _
      $region24: #{sequential_forward.1} parent=11 // pred_fallthru
        _
      // Predicated region
      $region25: #{sequential_forward.1} parent=11 // pred_check
        %p506 = pneg %p162
      $region26: #{sequential_forward.1} parent=11 // pred_check_branch
        %508 = sbr.rel (%p506) target = $region28
      $region27: #{sequential_forward.1} parent=11 // pred_region
        _
      $region28: #{sequential_forward.1} parent=11 // pred_fallthru
        _
      // Predicated region
      $region29: #{sequential_forward.1} parent=11 // pred_check
        %p509 = pneg %p183
      $region30: #{sequential_forward.1} parent=11 // pred_check_branch
        %511 = sbr.rel (%p509) target = $region32
      $region31: #{sequential_forward.1} parent=11 // pred_region
        _
      $region32: #{sequential_forward.1} parent=11 // pred_fallthru
        _
      // Predicated region
      $region33: #{sequential_forward.1} parent=11 // pred_check
        %p512 = pneg %p204
      $region34: #{sequential_forward.1} parent=11 // pred_check_branch
        %514 = sbr.rel (%p512) target = $region36
      $region35: #{sequential_forward.1} parent=11 // pred_region
        _
      $region36: #{sequential_forward.1} parent=11 // pred_fallthru
        _
      // Predicated region
      $region37: #{sequential_forward.1} parent=11 // pred_check
        %p515 = pneg %p225
      $region38: #{sequential_forward.1} parent=11 // pred_check_branch
        %517 = sbr.rel (%p515) target = $region40
      $region39: #{sequential_forward.1} parent=11 // pred_region
        _
      $region40: #{sequential_forward.1} parent=11 // pred_fallthru
        _
      // Predicated region
      $region41: #{sequential_forward.1} parent=11 // pred_check
        %p518 = pneg %p246
      $region42: #{sequential_forward.1} parent=11 // pred_check_branch
        %520 = sbr.rel (%p518) target = $region44
      $region43: #{sequential_forward.1} parent=11 // pred_region
        _
      $region44: #{sequential_forward.1} parent=11 // pred_fallthru
        _
      // Predicated region
      $region45: #{sequential_forward.1} parent=11 // pred_check
        %p521 = pneg %p267
      $region46: #{sequential_forward.1} parent=11 // pred_check_branch
        %523 = sbr.rel (%p521) target = $region48
      $region47: #{sequential_forward.1} parent=11 // pred_region
        _
      $region48: #{sequential_forward.1} parent=11 // pred_fallthru
        _
      // Predicated region
      $region49: #{sequential_forward.1} parent=11 // pred_check
        %p524 = pneg %p288
      $region50: #{sequential_forward.1} parent=11 // pred_check_branch
        %526 = sbr.rel (%p524) target = $region52
      $region51: #{sequential_forward.1} parent=11 // pred_region
        _
      $region52: #{sequential_forward.1} parent=11 // pred_fallthru
        _
      // Predicated region
      $region53: #{sequential_forward.1} parent=11 // pred_check
        %p527 = pneg %p309
      $region54: #{sequential_forward.1} parent=11 // pred_check_branch
        %529 = sbr.rel (%p527) target = $region56
      $region55: #{sequential_forward.1} parent=11 // pred_region
        _
      $region56: #{sequential_forward.1} parent=11 // pred_fallthru
        _
      // Predicated region
      $region57: #{sequential_forward.1} parent=11 // pred_check
        %p530 = pneg %p330
      $region58: #{sequential_forward.1} parent=11 // pred_check_branch
        %532 = sbr.rel (%p530) target = $region60
      $region59: #{sequential_forward.1} parent=11 // pred_region
        _
      $region60: #{sequential_forward.1} parent=11 // pred_fallthru
        _
      // Predicated region
      $region61: #{sequential_forward.1} parent=11 // pred_check
        %p533 = pneg %p351
      $region62: #{sequential_forward.1} parent=11 // pred_check_branch
        %535 = sbr.rel (%p533) target = $region64
      $region63: #{sequential_forward.1} parent=11 // pred_region
        _
      $region64: #{sequential_forward.1} parent=11 // pred_fallthru
        _
      // Predicated region
      $region65: #{sequential_forward.1} parent=11 // pred_check
        %p536 = pneg %p372
      $region66: #{sequential_forward.1} parent=11 // pred_check_branch
        %538 = sbr.rel (%p536) target = $region68
      $region67: #{sequential_forward.1} parent=11 // pred_region
        _
      $region68: #{sequential_forward.1} parent=11 // pred_fallthru
        _
      // Predicated region
      $region69: #{sequential_forward.1} parent=11 // pred_check
        %p539 = pneg %p393
      $region70: #{sequential_forward.1} parent=11 // pred_check_branch
        %541 = sbr.rel (%p539) target = $region72
      $region71: #{sequential_forward.1} parent=11 // pred_region
        _
      $region72: #{sequential_forward.1} parent=11 // pred_fallthru
        _
      // Predicated region
      $region73: #{sequential_forward.1} parent=11 // pred_check
        %p542 = pneg %p414
      $region74: #{sequential_forward.1} parent=11 // pred_check_branch
        %544 = sbr.rel (%p542) target = $region76
      $region75: #{sequential_forward.1} parent=11 // pred_region
        _
      $region76: #{sequential_forward.1} parent=11 // pred_fallthru
        _
      // Predicated region
      $region77: #{sequential_forward.1} parent=11 // pred_check
        %p545 = pneg %p435
      $region78: #{sequential_forward.1} parent=11 // pred_check_branch
        %547 = sbr.rel (%p545) target = $region80
      $region79: #{sequential_forward.1} parent=11 // pred_region
        _
      $region80: #{sequential_forward.1} parent=11 // pred_fallthru
        _
      // Predicated region
      $region81: #{sequential_forward.1} parent=11 // pred_check
        %p548 = pneg %p456
      $region82: #{sequential_forward.1} parent=11 // pred_check_branch
        %550 = sbr.rel (%p548) target = $region84
      $region83: #{sequential_forward.1} parent=11 // pred_region
        _
      $region84: #{sequential_forward.1} parent=11 // pred_fallthru
        _
    $region12: #{sequential_forward.1} parent=5 // pred_fallthru
      _
    %p551 = scmp.lt.s32.totalorder %s26, 2
    // Predicated region
    $region85: #{sequential_forward.1} parent=5 // pred_check
      %p552 = pneg %p551
    $region86: #{sequential_forward.1} parent=5 // pred_check_branch
      %554 = sbr.rel (%p552) target = $region88
    $region87: #{sequential_forward.1} parent=5 // pred_region
      // Predicated region
      $region89: #{sequential_forward.1} parent=87 // pred_check
        %p555 = pneg %p46
      $region90: #{sequential_forward.1} parent=87 // pred_check_branch
        %557 = sbr.rel (%p555) target = $region92
      $region91: #{sequential_forward.1} parent=87 // pred_region
        %p558 = scmp.lt.s32.totalorder %s26, 1
        %s559 = scalar_select %p558, %s26, 1
        %s560 = smul.addr %s559, 2
        %s561 = smul.addr %s560, 8
        %s562 = scalar_lea.vmem %s0, %s561
      $region92: #{sequential_forward.1} parent=87 // pred_fallthru
        _
      // Predicated region
      $region93: #{sequential_forward.1} parent=87 // pred_check
        %p563 = pneg %p72
      $region94: #{sequential_forward.1} parent=87 // pred_check_branch
        %565 = sbr.rel (%p563) target = $region96
      $region95: #{sequential_forward.1} parent=87 // pred_region
        %p566 = scmp.lt.s32.totalorder %s26, 1
        %s567 = scalar_select %p566, %s26, 1
        %s568 = smul.addr %s567, 8
        %s569 = scalar_lea.vmem %s1, %s568
      $region96: #{sequential_forward.1} parent=87 // pred_fallthru
        _
    $region88: #{sequential_forward.1} parent=5 // pred_fallthru
      _
    %p570 = scmp.le.s32.totalorder 1, %s26
    %p571 = scmp.lt.s32.totalorder %s26, 3
    %p572 = pnand %p570, %p571
    %p573 = pneg %p572
    // Predicated region
    $region97: #{sequential_forward.1} parent=5 // pred_check
      _
    $region98: #{sequential_forward.1} parent=5 // pred_check_branch
      %575 = sbr.rel (%p572) target = $region100
    $region99: #{sequential_forward.1} parent=5 // pred_region
      %s576 = ssub.s32 %s26, 1
      %p577 = scmp.lt.s32.totalorder %s31, 1
      %s578 = scalar_select %p577, %s31, 1
      %s579 = smul.addr %s578, 2
      %s580 = smul.addr %s579, 8
      %s581 = scalar_lea.vmem %s0, %s580
      %p582 = pneg %p52
      %p583 = pneg %p49
      %p584 = scmp.lt.s32.totalorder %s31, 1
      %s585 = scalar_select %p584, %s31, 1
      %s586 = smul.addr %s585, 8
      %s587 = scalar_lea.vmem %s1, %s586
      %p588 = pneg %p78
      %p589 = pneg %p75
      %p590 = pneg %p99
      %p591 = pneg %p96
      %p592 = pneg %p120
      %p593 = pneg %p117
      %p594 = pneg %p141
      %p595 = pneg %p138
      %p596 = pneg %p162
      %p597 = pneg %p159
      %p598 = pneg %p183
      %p599 = pneg %p180
      %p600 = pneg %p204
      %p601 = pneg %p201
      %p602 = pneg %p225
      %p603 = pneg %p222
      %p604 = pneg %p246
      %p605 = pneg %p243
      %p606 = pneg %p267
      %p607 = pneg %p264
      %p608 = pneg %p288
      %p609 = pneg %p285
      %p610 = pneg %p309
      %p611 = pneg %p306
      %p612 = pneg %p330
      %p613 = pneg %p327
      %p614 = pneg %p351
      %p615 = pneg %p348
      %p616 = pneg %p372
      %p617 = pneg %p369
      %p618 = pneg %p393
      %p619 = pneg %p390
      %p620 = pneg %p414
      %p621 = pneg %p411
      %p622 = pneg %p435
      %p623 = pneg %p432
      %p624 = pneg %p456
      %p625 = pneg %p453
      %p626 = pneg %p482
      %p627 = pneg %p479
      %p628 = scmp.lt.s32.totalorder %s31, 1
      %s629 = scalar_select %p628, %s31, 1
      %s630 = smul.addr %s629, 2
      %s631 = smul.addr %s630, 8
      %s632 = scalar_lea.vmem %s20, %s631
      %p633 = scmp.lt.s32.totalorder %s31, 1
      %s634 = scalar_select %p633, %s31, 1
      %s635 = smul.addr %s634, 2
      %s636 = smul.addr %s635, 8
      %s637 = scalar_lea.vmem %s0, %s636
      %p638 = scmp.lt.s32.totalorder %s31, 1
      %s639 = scalar_select %p638, %s31, 1
      %s640 = smul.addr %s639, 8
      %s641 = scalar_lea.vmem %s1, %s640
      %p642 = scmp.lt.s32.totalorder %s31, 1
      %s643 = scalar_select %p642, %s31, 1
      %s644 = smul.addr %s643, 2
      %s645 = smul.addr %s644, 8
      %s646 = scalar_lea.vmem %s20, %s645
      %v647 = vld [vmem:[%s637] sm:$0xff]
      %v648 = vld [vmem:[%s637 + $0x8] sm:$0xff]
      %v649 = vld [vmem:[%s641] sm:$0xff]
      %v650 = vadd.f32 %v647, %v648
      %651 = vadd.xlane.f32.xlu0 %v650
      %v652 = vpop.xlane.xlu0 %651
      %v653 = vrcp.pop 256.0
      %v654 = vmul.f32 %v652, %v653
      %v655 = vld [vmem:[%s2] sm:$0xff]
      %v656 = vld [vmem:[%s2 + $0x8] sm:$0xff]
      %v657 = vld [vmem:[%s3] sm:$0xff]
      %v658 = vld [vmem:[%s3 + $0x8] sm:$0xff]
      %vm659 = vcmask 130048
      %v661 = vsel %vm659, %v655, 0
      %v664 = vsel %vm659, %v656, 0
      %666 = vmatprep.subr.mxu0 0.0
      %667 = vmatpush1.msra.mxu0 0.0
      %668 = vmatprep.subr.mxu0 0.0
      %669 = vmatpush1.msra.mxu0 0.0
      %670 = vmatprep.subr.mxu0 0.0
      %671 = vmatpush1.msra.mxu0 0.0
      %672 = vmatprep.subr.mxu0 0.0
      %673 = vmatpush1.msra.mxu0 0.0
      %674 = vmatprep.subr.mxu0 0.0
      %675 = vmatpush1.msra.mxu0 0.0
      %676 = vmatprep.subr.mxu0 0.0
      %677 = vmatpush1.msra.mxu0 0.0
      %678 = vmatprep.subr.mxu0 0.0
      %679 = vmatpush1.msra.mxu0 0.0
      %680 = vmatprep.subr.mxu0 0.0
      %681 = vmatpush1.msra.mxu0 0.0
      %682 = vmatprep.subr.mxu0 0.0
      %683 = vmatpush1.msra.mxu0 0.0
      %684 = vmatprep.subr.mxu0 0.0
      %685 = vmatpush1.msra.mxu0 0.0
      %686 = vmatprep.subr.mxu0 0.0
      %687 = vmatpush1.msra.mxu0 0.0
      %688 = vmatprep.subr.mxu0 0.0
      %689 = vmatpush1.msra.mxu0 0.0
      %690 = vmatprep.subr.mxu0 0.0
      %691 = vmatpush1.msra.mxu0 0.0
      %692 = vmatprep.subr.mxu0 0.0
      %693 = vmatpush1.msra.mxu0 0.0
      %694 = vmatprep.subr.mxu0 0.0
      %695 = vmatpush1.msra.mxu0 %v649
      %696 = vmatprep.subr.mxu0 0.0
      %697 = vmatpush1.msra.mxu0 %v654
      %698 = vmatprep.subr.mxu0 0.0
      %699 = vmatpush2.msra.mxu0 0.0
      %700 = vmatprep.subr.mxu0 0.0
      %701 = vmatpush2.msra.mxu0 0.0
      %702 = vmatprep.subr.mxu0 0.0
      %703 = vmatpush2.msra.mxu0 0.0
      %704 = vmatprep.subr.mxu0 0.0
      %705 = vmatpush2.msra.mxu0 0.0
      %706 = vmatprep.subr.mxu0 0.0
      %707 = vmatpush2.msra.mxu0 0.0
      %708 = vmatprep.subr.mxu0 0.0
      %709 = vmatpush2.msra.mxu0 0.0
      %710 = vmatprep.subr.mxu0 0.0
      %711 = vmatpush2.msra.mxu0 0.0
      %712 = vmatprep.subr.mxu0 0.0
      %713 = vmatpush2.msra.mxu0 0.0
      %714 = vmatprep.subr.mxu0 0.0
      %715 = vmatpush2.msra.mxu0 0.0
      %716 = vmatprep.subr.mxu0 0.0
      %717 = vmatpush2.msra.mxu0 0.0
      %718 = vmatprep.subr.mxu0 0.0
      %719 = vmatpush2.msra.mxu0 0.0
      %720 = vmatprep.subr.mxu0 0.0
      %721 = vmatpush2.msra.mxu0 0.0
      %722 = vmatprep.subr.mxu0 0.0
      %723 = vmatpush2.msra.mxu0 0.0
      %724 = vmatprep.subr.mxu0 0.0
      %725 = vmatpush2.msra.mxu0 0.0
      %726 = vmatprep.subr.mxu0 0.0
      %727 = vmatpush2.msra.mxu0 0.0
      %728 = vmatprep.subr.mxu0 0.0
      %729 = vmatpush2.msra.mxu0 0.0
      %730 = vmatprep.mubr.f32.mxu0 0.0
      %731 = vmatmul.mubr.f32.gmra.mxu0 %v661
      %v732 = vpop.f32.mrf.mxu0
      %v733 = vadd.f32 %v657, %v732
      %v734 = vpop.f32.mrf.mxu0
      %735 = vmatprep.mubr.f32.mxu0 0.0
      %736 = vmatmul.mubr.f32.gmra.mxu0 %v664
      %v737 = vpop.f32.mrf.mxu0
      %v738 = vadd.f32 %v658, %v737
      %v739 = vpop.f32.mrf.mxu0
      %740 = vdwg.mxu0
      %v741 = vmax.f32 %v733, 0.0
      %v742 = vmax.f32 %v738, 0.0
      %v743 = vld [vmem:[%s4] sm:$0xff]
      %v744 = vld [vmem:[%s4 + $0x8] sm:$0xff]
      %v745 = vld [vmem:[%s5] sm:$0xff]
      %v746 = vld [vmem:[%s5 + $0x8] sm:$0xff]
      %v748 = vsel %vm659, %v743, 0
      %v751 = vsel %vm659, %v744, 0
      %753 = vmatprep.subr.mxu0 0.0
      %754 = vmatpush1.msra.mxu0 0.0
      %755 = vmatprep.subr.mxu0 0.0
      %756 = vmatpush1.msra.mxu0 0.0
      %757 = vmatprep.subr.mxu0 0.0
      %758 = vmatpush1.msra.mxu0 0.0
      %759 = vmatprep.subr.mxu0 0.0
      %760 = vmatpush1.msra.mxu0 0.0
      %761 = vmatprep.subr.mxu0 0.0
      %762 = vmatpush1.msra.mxu0 0.0
      %763 = vmatprep.subr.mxu0 0.0
      %764 = vmatpush1.msra.mxu0 0.0
      %765 = vmatprep.subr.mxu0 0.0
      %766 = vmatpush1.msra.mxu0 0.0
      %767 = vmatprep.subr.mxu0 0.0
      %768 = vmatpush1.msra.mxu0 0.0
      %769 = vmatprep.subr.mxu0 0.0
      %770 = vmatpush1.msra.mxu0 0.0
      %771 = vmatprep.subr.mxu0 0.0
      %772 = vmatpush1.msra.mxu0 0.0
      %773 = vmatprep.subr.mxu0 0.0
      %774 = vmatpush1.msra.mxu0 0.0
      %775 = vmatprep.subr.mxu0 0.0
      %776 = vmatpush1.msra.mxu0 0.0
      %777 = vmatprep.subr.mxu0 0.0
      %778 = vmatpush1.msra.mxu0 0.0
      %779 = vmatprep.subr.mxu0 0.0
      %780 = vmatpush1.msra.mxu0 0.0
      %781 = vmatprep.subr.mxu0 0.0
      %782 = vmatpush1.msra.mxu0 %v742
      %783 = vmatprep.subr.mxu0 0.0
      %784 = vmatpush1.msra.mxu0 %v741
      %785 = vmatprep.subr.mxu0 0.0
      %786 = vmatpush2.msra.mxu0 0.0
      %787 = vmatprep.subr.mxu0 0.0
      %788 = vmatpush2.msra.mxu0 0.0
      %789 = vmatprep.subr.mxu0 0.0
      %790 = vmatpush2.msra.mxu0 0.0
      %791 = vmatprep.subr.mxu0 0.0
      %792 = vmatpush2.msra.mxu0 0.0
      %793 = vmatprep.subr.mxu0 0.0
      %794 = vmatpush2.msra.mxu0 0.0
      %795 = vmatprep.subr.mxu0 0.0
      %796 = vmatpush2.msra.mxu0 0.0
      %797 = vmatprep.subr.mxu0 0.0
      %798 = vmatpush2.msra.mxu0 0.0
      %799 = vmatprep.subr.mxu0 0.0
      %800 = vmatpush2.msra.mxu0 0.0
      %801 = vmatprep.subr.mxu0 0.0
      %802 = vmatpush2.msra.mxu0 0.0
      %803 = vmatprep.subr.mxu0 0.0
      %804 = vmatpush2.msra.mxu0 0.0
      %805 = vmatprep.subr.mxu0 0.0
      %806 = vmatpush2.msra.mxu0 0.0
      %807 = vmatprep.subr.mxu0 0.0
      %808 = vmatpush2.msra.mxu0 0.0
      %809 = vmatprep.subr.mxu0 0.0
      %810 = vmatpush2.msra.mxu0 0.0
      %811 = vmatprep.subr.mxu0 0.0
      %812 = vmatpush2.msra.mxu0 0.0
      %813 = vmatprep.subr.mxu0 0.0
      %814 = vmatpush2.msra.mxu0 0.0
      %815 = vmatprep.subr.mxu0 0.0
      %816 = vmatpush2.msra.mxu0 0.0
      %817 = vmatprep.mubr.f32.mxu0 0.0
      %818 = vmatmul.mubr.f32.gmra.mxu0 %v748
      %v819 = vpop.f32.mrf.mxu0
      %v820 = vadd.f32 %v745, %v819
      %v821 = vpop.f32.mrf.mxu0
      %822 = vmatprep.mubr.f32.mxu0 0.0
      %823 = vmatmul.mubr.f32.gmra.mxu0 %v751
      %v824 = vpop.f32.mrf.mxu0
      %v825 = vadd.f32 %v746, %v824
      %v826 = vpop.f32.mrf.mxu0
      %827 = vdwg.mxu0
      %829 = vset.pattern.permute.xlu0 0
      %830 = vperm.xlu0 %829, %v820
      %v831 = vpop.permute.xlu0 %830
      %v833 = vmul.f32 %v647, %v831
      %v834 = vmul.f32 %v648, %v831
      %836 = vset.pattern.permute.xlu0 0
      %837 = vperm.xlu0 %836, %v825
      %v838 = vpop.permute.xlu0 %837
      %v840 = vadd.f32 %v833, %v838
      %v841 = vadd.f32 %v834, %v838
      %v842 = vld [vmem:[%s6] sm:$0xff]
      %v843 = vld [vmem:[%s7] sm:$0xff]
      %845 = vset.pattern.permute.xlu0 0
      %846 = vperm.xlu0 %845, %v843
      %v847 = vpop.permute.xlu0 %846
      %vm849 = vcmask 64512
      %v851 = vsel %vm849, %v842, 0
      %853 = vmatprep.subr.mxu0 0.0
      %854 = vmatpush1.msra.mxu0 0.0
      %855 = vmatprep.subr.mxu0 0.0
      %856 = vmatpush1.msra.mxu0 0.0
      %857 = vmatprep.subr.mxu0 0.0
      %858 = vmatpush1.msra.mxu0 0.0
      %859 = vmatprep.subr.mxu0 0.0
      %860 = vmatpush1.msra.mxu0 0.0
      %861 = vmatprep.subr.mxu0 0.0
      %862 = vmatpush1.msra.mxu0 0.0
      %863 = vmatprep.subr.mxu0 0.0
      %864 = vmatpush1.msra.mxu0 0.0
      %865 = vmatprep.subr.mxu0 0.0
      %866 = vmatpush1.msra.mxu0 0.0
      %867 = vmatprep.subr.mxu0 0.0
      %868 = vmatpush1.msra.mxu0 0.0
      %869 = vmatprep.subr.mxu0 0.0
      %870 = vmatpush1.msra.mxu0 0.0
      %871 = vmatprep.subr.mxu0 0.0
      %872 = vmatpush1.msra.mxu0 0.0
      %873 = vmatprep.subr.mxu0 0.0
      %874 = vmatpush1.msra.mxu0 0.0
      %875 = vmatprep.subr.mxu0 0.0
      %876 = vmatpush1.msra.mxu0 0.0
      %877 = vmatprep.subr.mxu0 0.0
      %878 = vmatpush1.msra.mxu0 0.0
      %879 = vmatprep.subr.mxu0 0.0
      %880 = vmatpush1.msra.mxu0 0.0
      %881 = vmatprep.subr.mxu0 0.0
      %882 = vmatpush1.msra.mxu0 0.0
      %883 = vmatprep.subr.mxu0 %v841
      %884 = vmatpush1.msra.mxu0 %v840
      %885 = vmatprep.subr.mxu0 0.0
      %886 = vmatpush2.msra.mxu0 0.0
      %887 = vmatprep.subr.mxu0 0.0
      %888 = vmatpush2.msra.mxu0 0.0
      %889 = vmatprep.subr.mxu0 0.0
      %890 = vmatpush2.msra.mxu0 0.0
      %891 = vmatprep.subr.mxu0 0.0
      %892 = vmatpush2.msra.mxu0 0.0
      %893 = vmatprep.subr.mxu0 0.0
      %894 = vmatpush2.msra.mxu0 0.0
      %895 = vmatprep.subr.mxu0 0.0
      %896 = vmatpush2.msra.mxu0 0.0
      %897 = vmatprep.subr.mxu0 0.0
      %898 = vmatpush2.msra.mxu0 0.0
      %899 = vmatprep.subr.mxu0 0.0
      %900 = vmatpush2.msra.mxu0 0.0
      %901 = vmatprep.subr.mxu0 0.0
      %902 = vmatpush2.msra.mxu0 0.0
      %903 = vmatprep.subr.mxu0 0.0
      %904 = vmatpush2.msra.mxu0 0.0
      %905 = vmatprep.subr.mxu0 0.0
      %906 = vmatpush2.msra.mxu0 0.0
      %907 = vmatprep.subr.mxu0 0.0
      %908 = vmatpush2.msra.mxu0 0.0
      %909 = vmatprep.subr.mxu0 0.0
      %910 = vmatpush2.msra.mxu0 0.0
      %911 = vmatprep.subr.mxu0 0.0
      %912 = vmatpush2.msra.mxu0 0.0
      %913 = vmatprep.subr.mxu0 0.0
      %914 = vmatpush2.msra.mxu0 0.0
      %915 = vmatprep.subr.mxu0 0.0
      %916 = vmatpush2.msra.mxu0 0.0
      %917 = vmatprep.mubr.f32.mxu0 0.0
      %918 = vmatmul.mubr.f32.gmra.mxu0 %v851
      %v919 = vpop.f32.mrf.mxu0
      %v920 = vadd.f32 %v847, %v919
      %v921 = vpop.f32.mrf.mxu0
      %v922 = vadd.f32 %v847, %v921
      %923 = vdwg.mxu0
      %v924 = vmax.f32 %v920, 0.0
      %v925 = vmax.f32 %v922, 0.0
      %v926 = vadd.f32 %v924, %v925
      %927 = vadd.xlane.f32.xlu0 %v926
      %v928 = vpop.xlane.xlu0 %927
      %v929 = vmul.f32 %v928, %v653
      %v930 = vld [vmem:[%s8] sm:$0xff]
      %v931 = vld [vmem:[%s8 + $0x8] sm:$0xff]
      %v932 = vld [vmem:[%s9] sm:$0xff]
      %v933 = vld [vmem:[%s9 + $0x8] sm:$0xff]
      %v935 = vsel %vm659, %v930, 0
      %v938 = vsel %vm659, %v931, 0
      %940 = vmatprep.subr.mxu0 0.0
      %941 = vmatpush1.msra.mxu0 0.0
      %942 = vmatprep.subr.mxu0 0.0
      %943 = vmatpush1.msra.mxu0 0.0
      %944 = vmatprep.subr.mxu0 0.0
      %945 = vmatpush1.msra.mxu0 0.0
      %946 = vmatprep.subr.mxu0 0.0
      %947 = vmatpush1.msra.mxu0 0.0
      %948 = vmatprep.subr.mxu0 0.0
      %949 = vmatpush1.msra.mxu0 0.0
      %950 = vmatprep.subr.mxu0 0.0
      %951 = vmatpush1.msra.mxu0 0.0
      %952 = vmatprep.subr.mxu0 0.0
      %953 = vmatpush1.msra.mxu0 0.0
      %954 = vmatprep.subr.mxu0 0.0
      %955 = vmatpush1.msra.mxu0 0.0
      %956 = vmatprep.subr.mxu0 0.0
      %957 = vmatpush1.msra.mxu0 0.0
      %958 = vmatprep.subr.mxu0 0.0
      %959 = vmatpush1.msra.mxu0 0.0
      %960 = vmatprep.subr.mxu0 0.0
      %961 = vmatpush1.msra.mxu0 0.0
      %962 = vmatprep.subr.mxu0 0.0
      %963 = vmatpush1.msra.mxu0 0.0
      %964 = vmatprep.subr.mxu0 0.0
      %965 = vmatpush1.msra.mxu0 0.0
      %966 = vmatprep.subr.mxu0 0.0
      %967 = vmatpush1.msra.mxu0 0.0
      %968 = vmatprep.subr.mxu0 0.0
      %969 = vmatpush1.msra.mxu0 %v649
      %970 = vmatprep.subr.mxu0 0.0
      %971 = vmatpush1.msra.mxu0 %v929
      %972 = vmatprep.subr.mxu0 0.0
      %973 = vmatpush2.msra.mxu0 0.0
      %974 = vmatprep.subr.mxu0 0.0
      %975 = vmatpush2.msra.mxu0 0.0
      %976 = vmatprep.subr.mxu0 0.0
      %977 = vmatpush2.msra.mxu0 0.0
      %978 = vmatprep.subr.mxu0 0.0
      %979 = vmatpush2.msra.mxu0 0.0
      %980 = vmatprep.subr.mxu0 0.0
      %981 = vmatpush2.msra.mxu0 0.0
      %982 = vmatprep.subr.mxu0 0.0
      %983 = vmatpush2.msra.mxu0 0.0
      %984 = vmatprep.subr.mxu0 0.0
      %985 = vmatpush2.msra.mxu0 0.0
      %986 = vmatprep.subr.mxu0 0.0
      %987 = vmatpush2.msra.mxu0 0.0
      %988 = vmatprep.subr.mxu0 0.0
      %989 = vmatpush2.msra.mxu0 0.0
      %990 = vmatprep.subr.mxu0 0.0
      %991 = vmatpush2.msra.mxu0 0.0
      %992 = vmatprep.subr.mxu0 0.0
      %993 = vmatpush2.msra.mxu0 0.0
      %994 = vmatprep.subr.mxu0 0.0
      %995 = vmatpush2.msra.mxu0 0.0
      %996 = vmatprep.subr.mxu0 0.0
      %997 = vmatpush2.msra.mxu0 0.0
      %998 = vmatprep.subr.mxu0 0.0
      %999 = vmatpush2.msra.mxu0 0.0
      %1000 = vmatprep.subr.mxu0 0.0
      %1001 = vmatpush2.msra.mxu0 0.0
      %1002 = vmatprep.subr.mxu0 0.0
      %1003 = vmatpush2.msra.mxu0 0.0
      %1004 = vmatprep.mubr.f32.mxu0 0.0
      %1005 = vmatmul.mubr.f32.gmra.mxu0 %v935
      %v1006 = vpop.f32.mrf.mxu0
      %v1007 = vadd.f32 %v932, %v1006
      %v1008 = vpop.f32.mrf.mxu0
      %1009 = vmatprep.mubr.f32.mxu0 0.0
      %1010 = vmatmul.mubr.f32.gmra.mxu0 %v938
      %v1011 = vpop.f32.mrf.mxu0
      %v1012 = vadd.f32 %v933, %v1011
      %v1013 = vpop.f32.mrf.mxu0
      %1014 = vdwg.mxu0
      %v1015 = vmax.f32 %v1007, 0.0
      %v1016 = vmax.f32 %v1012, 0.0
      %v1017 = vld [vmem:[%s10] sm:$0xff]
      %v1018 = vld [vmem:[%s10 + $0x8] sm:$0xff]
      %v1019 = vld [vmem:[%s11] sm:$0xff]
      %v1020 = vld [vmem:[%s11 + $0x8] sm:$0xff]
      %v1022 = vsel %vm659, %v1017, 0
      %v1025 = vsel %vm659, %v1018, 0
      %1027 = vmatprep.subr.mxu0 0.0
      %1028 = vmatpush1.msra.mxu0 0.0
      %1029 = vmatprep.subr.mxu0 0.0
      %1030 = vmatpush1.msra.mxu0 0.0
      %1031 = vmatprep.subr.mxu0 0.0
      %1032 = vmatpush1.msra.mxu0 0.0
      %1033 = vmatprep.subr.mxu0 0.0
      %1034 = vmatpush1.msra.mxu0 0.0
      %1035 = vmatprep.subr.mxu0 0.0
      %1036 = vmatpush1.msra.mxu0 0.0
      %1037 = vmatprep.subr.mxu0 0.0
      %1038 = vmatpush1.msra.mxu0 0.0
      %1039 = vmatprep.subr.mxu0 0.0
      %1040 = vmatpush1.msra.mxu0 0.0
      %1041 = vmatprep.subr.mxu0 0.0
      %1042 = vmatpush1.msra.mxu0 0.0
      %1043 = vmatprep.subr.mxu0 0.0
      %1044 = vmatpush1.msra.mxu0 0.0
      %1045 = vmatprep.subr.mxu0 0.0
      %1046 = vmatpush1.msra.mxu0 0.0
      %1047 = vmatprep.subr.mxu0 0.0
      %1048 = vmatpush1.msra.mxu0 0.0
      %1049 = vmatprep.subr.mxu0 0.0
      %1050 = vmatpush1.msra.mxu0 0.0
      %1051 = vmatprep.subr.mxu0 0.0
      %1052 = vmatpush1.msra.mxu0 0.0
      %1053 = vmatprep.subr.mxu0 0.0
      %1054 = vmatpush1.msra.mxu0 0.0
      %1055 = vmatprep.subr.mxu0 0.0
      %1056 = vmatpush1.msra.mxu0 %v1016
      %1057 = vmatprep.subr.mxu0 0.0
      %1058 = vmatpush1.msra.mxu0 %v1015
      %1059 = vmatprep.subr.mxu0 0.0
      %1060 = vmatpush2.msra.mxu0 0.0
      %1061 = vmatprep.subr.mxu0 0.0
      %1062 = vmatpush2.msra.mxu0 0.0
      %1063 = vmatprep.subr.mxu0 0.0
      %1064 = vmatpush2.msra.mxu0 0.0
      %1065 = vmatprep.subr.mxu0 0.0
      %1066 = vmatpush2.msra.mxu0 0.0
      %1067 = vmatprep.subr.mxu0 0.0
      %1068 = vmatpush2.msra.mxu0 0.0
      %1069 = vmatprep.subr.mxu0 0.0
      %1070 = vmatpush2.msra.mxu0 0.0
      %1071 = vmatprep.subr.mxu0 0.0
      %1072 = vmatpush2.msra.mxu0 0.0
      %1073 = vmatprep.subr.mxu0 0.0
      %1074 = vmatpush2.msra.mxu0 0.0
      %1075 = vmatprep.subr.mxu0 0.0
      %1076 = vmatpush2.msra.mxu0 0.0
      %1077 = vmatprep.subr.mxu0 0.0
      %1078 = vmatpush2.msra.mxu0 0.0
      %1079 = vmatprep.subr.mxu0 0.0
      %1080 = vmatpush2.msra.mxu0 0.0
      %1081 = vmatprep.subr.mxu0 0.0
      %1082 = vmatpush2.msra.mxu0 0.0
      %1083 = vmatprep.subr.mxu0 0.0
      %1084 = vmatpush2.msra.mxu0 0.0
      %1085 = vmatprep.subr.mxu0 0.0
      %1086 = vmatpush2.msra.mxu0 0.0
      %1087 = vmatprep.subr.mxu0 0.0
      %1088 = vmatpush2.msra.mxu0 0.0
      %1089 = vmatprep.subr.mxu0 0.0
      %1090 = vmatpush2.msra.mxu0 0.0
      %1091 = vmatprep.mubr.f32.mxu0 0.0
      %1092 = vmatmul.mubr.f32.gmra.mxu0 %v1022
      %v1093 = vpop.f32.mrf.mxu0
      %v1094 = vadd.f32 %v1019, %v1093
      %v1095 = vpop.f32.mrf.mxu0
      %1096 = vmatprep.mubr.f32.mxu0 0.0
      %1097 = vmatmul.mubr.f32.gmra.mxu0 %v1025
      %v1098 = vpop.f32.mrf.mxu0
      %v1099 = vadd.f32 %v1020, %v1098
      %v1100 = vpop.f32.mrf.mxu0
      %1101 = vdwg.mxu0
      %1103 = vset.pattern.permute.xlu0 0
      %1104 = vperm.xlu0 %1103, %v1094
      %v1105 = vpop.permute.xlu0 %1104
      %v1107 = vmul.f32 %v924, %v1105
      %v1108 = vmul.f32 %v925, %v1105
      %1110 = vset.pattern.permute.xlu0 0
      %1111 = vperm.xlu0 %1110, %v1099
      %v1112 = vpop.permute.xlu0 %1111
      %v1114 = vadd.f32 %v1107, %v1112
      %v1115 = vadd.f32 %v1108, %v1112
      %v1116 = vld [vmem:[%s12] sm:$0xff]
      %v1117 = vld [vmem:[%s13] sm:$0xff]
      %1119 = vset.pattern.permute.xlu0 0
      %1120 = vperm.xlu0 %1119, %v1117
      %v1121 = vpop.permute.xlu0 %1120
      %v1124 = vsel %vm849, %v1116, 0
      %1126 = vmatprep.subr.mxu0 0.0
      %1127 = vmatpush1.msra.mxu0 0.0
      %1128 = vmatprep.subr.mxu0 0.0
      %1129 = vmatpush1.msra.mxu0 0.0
      %1130 = vmatprep.subr.mxu0 0.0
      %1131 = vmatpush1.msra.mxu0 0.0
      %1132 = vmatprep.subr.mxu0 0.0
      %1133 = vmatpush1.msra.mxu0 0.0
      %1134 = vmatprep.subr.mxu0 0.0
      %1135 = vmatpush1.msra.mxu0 0.0
      %1136 = vmatprep.subr.mxu0 0.0
      %1137 = vmatpush1.msra.mxu0 0.0
      %1138 = vmatprep.subr.mxu0 0.0
      %1139 = vmatpush1.msra.mxu0 0.0
      %1140 = vmatprep.subr.mxu0 0.0
      %1141 = vmatpush1.msra.mxu0 0.0
      %1142 = vmatprep.subr.mxu0 0.0
      %1143 = vmatpush1.msra.mxu0 0.0
      %1144 = vmatprep.subr.mxu0 0.0
      %1145 = vmatpush1.msra.mxu0 0.0
      %1146 = vmatprep.subr.mxu0 0.0
      %1147 = vmatpush1.msra.mxu0 0.0
      %1148 = vmatprep.subr.mxu0 0.0
      %1149 = vmatpush1.msra.mxu0 0.0
      %1150 = vmatprep.subr.mxu0 0.0
      %1151 = vmatpush1.msra.mxu0 0.0
      %1152 = vmatprep.subr.mxu0 0.0
      %1153 = vmatpush1.msra.mxu0 0.0
      %1154 = vmatprep.subr.mxu0 0.0
      %1155 = vmatpush1.msra.mxu0 0.0
      %1156 = vmatprep.subr.mxu0 %v1115
      %1157 = vmatpush1.msra.mxu0 %v1114
      %1158 = vmatprep.subr.mxu0 0.0
      %1159 = vmatpush2.msra.mxu0 0.0
      %1160 = vmatprep.subr.mxu0 0.0
      %1161 = vmatpush2.msra.mxu0 0.0
      %1162 = vmatprep.subr.mxu0 0.0
      %1163 = vmatpush2.msra.mxu0 0.0
      %1164 = vmatprep.subr.mxu0 0.0
      %1165 = vmatpush2.msra.mxu0 0.0
      %1166 = vmatprep.subr.mxu0 0.0
      %1167 = vmatpush2.msra.mxu0 0.0
      %1168 = vmatprep.subr.mxu0 0.0
      %1169 = vmatpush2.msra.mxu0 0.0
      %1170 = vmatprep.subr.mxu0 0.0
      %1171 = vmatpush2.msra.mxu0 0.0
      %1172 = vmatprep.subr.mxu0 0.0
      %1173 = vmatpush2.msra.mxu0 0.0
      %1174 = vmatprep.subr.mxu0 0.0
      %1175 = vmatpush2.msra.mxu0 0.0
      %1176 = vmatprep.subr.mxu0 0.0
      %1177 = vmatpush2.msra.mxu0 0.0
      %1178 = vmatprep.subr.mxu0 0.0
      %1179 = vmatpush2.msra.mxu0 0.0
      %1180 = vmatprep.subr.mxu0 0.0
      %1181 = vmatpush2.msra.mxu0 0.0
      %1182 = vmatprep.subr.mxu0 0.0
      %1183 = vmatpush2.msra.mxu0 0.0
      %1184 = vmatprep.subr.mxu0 0.0
      %1185 = vmatpush2.msra.mxu0 0.0
      %1186 = vmatprep.subr.mxu0 0.0
      %1187 = vmatpush2.msra.mxu0 0.0
      %1188 = vmatprep.subr.mxu0 0.0
      %1189 = vmatpush2.msra.mxu0 0.0
      %1190 = vmatprep.mubr.f32.mxu0 0.0
      %1191 = vmatmul.mubr.f32.gmra.mxu0 %v1124
      %v1192 = vpop.f32.mrf.mxu0
      %v1193 = vadd.f32 %v1121, %v1192
      %v1194 = vpop.f32.mrf.mxu0
      %v1195 = vadd.f32 %v1121, %v1194
      %1196 = vdwg.mxu0
      %v1197 = vmax.f32 %v1193, 0.0
      %v1198 = vmax.f32 %v1195, 0.0
      %v1199 = vadd.f32 %v1197, %v1198
      %1200 = vadd.xlane.f32.xlu0 %v1199
      %v1201 = vpop.xlane.xlu0 %1200
      %v1202 = vmul.f32 %v1201, %v653
      %v1203 = vld [vmem:[%s14] sm:$0xff]
      %v1204 = vld [vmem:[%s14 + $0x8] sm:$0xff]
      %v1205 = vld [vmem:[%s15] sm:$0xff]
      %v1206 = vld [vmem:[%s15 + $0x8] sm:$0xff]
      %v1208 = vsel %vm659, %v1203, 0
      %v1211 = vsel %vm659, %v1204, 0
      %1213 = vmatprep.subr.mxu0 0.0
      %1214 = vmatpush1.msra.mxu0 0.0
      %1215 = vmatprep.subr.mxu0 0.0
      %1216 = vmatpush1.msra.mxu0 0.0
      %1217 = vmatprep.subr.mxu0 0.0
      %1218 = vmatpush1.msra.mxu0 0.0
      %1219 = vmatprep.subr.mxu0 0.0
      %1220 = vmatpush1.msra.mxu0 0.0
      %1221 = vmatprep.subr.mxu0 0.0
      %1222 = vmatpush1.msra.mxu0 0.0
      %1223 = vmatprep.subr.mxu0 0.0
      %1224 = vmatpush1.msra.mxu0 0.0
      %1225 = vmatprep.subr.mxu0 0.0
      %1226 = vmatpush1.msra.mxu0 0.0
      %1227 = vmatprep.subr.mxu0 0.0
      %1228 = vmatpush1.msra.mxu0 0.0
      %1229 = vmatprep.subr.mxu0 0.0
      %1230 = vmatpush1.msra.mxu0 0.0
      %1231 = vmatprep.subr.mxu0 0.0
      %1232 = vmatpush1.msra.mxu0 0.0
      %1233 = vmatprep.subr.mxu0 0.0
      %1234 = vmatpush1.msra.mxu0 0.0
      %1235 = vmatprep.subr.mxu0 0.0
      %1236 = vmatpush1.msra.mxu0 0.0
      %1237 = vmatprep.subr.mxu0 0.0
      %1238 = vmatpush1.msra.mxu0 0.0
      %1239 = vmatprep.subr.mxu0 0.0
      %1240 = vmatpush1.msra.mxu0 0.0
      %1241 = vmatprep.subr.mxu0 0.0
      %1242 = vmatpush1.msra.mxu0 %v649
      %1243 = vmatprep.subr.mxu0 0.0
      %1244 = vmatpush1.msra.mxu0 %v1202
      %1245 = vmatprep.subr.mxu0 0.0
      %1246 = vmatpush2.msra.mxu0 0.0
      %1247 = vmatprep.subr.mxu0 0.0
      %1248 = vmatpush2.msra.mxu0 0.0
      %1249 = vmatprep.subr.mxu0 0.0
      %1250 = vmatpush2.msra.mxu0 0.0
      %1251 = vmatprep.subr.mxu0 0.0
      %1252 = vmatpush2.msra.mxu0 0.0
      %1253 = vmatprep.subr.mxu0 0.0
      %1254 = vmatpush2.msra.mxu0 0.0
      %1255 = vmatprep.subr.mxu0 0.0
      %1256 = vmatpush2.msra.mxu0 0.0
      %1257 = vmatprep.subr.mxu0 0.0
      %1258 = vmatpush2.msra.mxu0 0.0
      %1259 = vmatprep.subr.mxu0 0.0
      %1260 = vmatpush2.msra.mxu0 0.0
      %1261 = vmatprep.subr.mxu0 0.0
      %1262 = vmatpush2.msra.mxu0 0.0
      %1263 = vmatprep.subr.mxu0 0.0
      %1264 = vmatpush2.msra.mxu0 0.0
      %1265 = vmatprep.subr.mxu0 0.0
      %1266 = vmatpush2.msra.mxu0 0.0
      %1267 = vmatprep.subr.mxu0 0.0
      %1268 = vmatpush2.msra.mxu0 0.0
      %1269 = vmatprep.subr.mxu0 0.0
      %1270 = vmatpush2.msra.mxu0 0.0
      %1271 = vmatprep.subr.mxu0 0.0
      %1272 = vmatpush2.msra.mxu0 0.0
      %1273 = vmatprep.subr.mxu0 0.0
      %1274 = vmatpush2.msra.mxu0 0.0
      %1275 = vmatprep.subr.mxu0 0.0
      %1276 = vmatpush2.msra.mxu0 0.0
      %1277 = vmatprep.mubr.f32.mxu0 0.0
      %1278 = vmatmul.mubr.f32.gmra.mxu0 %v1208
      %v1279 = vpop.f32.mrf.mxu0
      %v1280 = vadd.f32 %v1205, %v1279
      %v1281 = vpop.f32.mrf.mxu0
      %1282 = vmatprep.mubr.f32.mxu0 0.0
      %1283 = vmatmul.mubr.f32.gmra.mxu0 %v1211
      %v1284 = vpop.f32.mrf.mxu0
      %v1285 = vadd.f32 %v1206, %v1284
      %v1286 = vpop.f32.mrf.mxu0
      %1287 = vdwg.mxu0
      %v1288 = vmax.f32 %v1280, 0.0
      %v1289 = vmax.f32 %v1285, 0.0
      %v1290 = vld [vmem:[%s16] sm:$0xff]
      %v1291 = vld [vmem:[%s16 + $0x8] sm:$0xff]
      %v1292 = vld [vmem:[%s17] sm:$0xff]
      %v1293 = vld [vmem:[%s17 + $0x8] sm:$0xff]
      %v1295 = vsel %vm659, %v1290, 0
      %v1298 = vsel %vm659, %v1291, 0
      %1300 = vmatprep.subr.mxu0 0.0
      %1301 = vmatpush1.msra.mxu0 0.0
      %1302 = vmatprep.subr.mxu0 0.0
      %1303 = vmatpush1.msra.mxu0 0.0
      %1304 = vmatprep.subr.mxu0 0.0
      %1305 = vmatpush1.msra.mxu0 0.0
      %1306 = vmatprep.subr.mxu0 0.0
      %1307 = vmatpush1.msra.mxu0 0.0
      %1308 = vmatprep.subr.mxu0 0.0
      %1309 = vmatpush1.msra.mxu0 0.0
      %1310 = vmatprep.subr.mxu0 0.0
      %1311 = vmatpush1.msra.mxu0 0.0
      %1312 = vmatprep.subr.mxu0 0.0
      %1313 = vmatpush1.msra.mxu0 0.0
      %1314 = vmatprep.subr.mxu0 0.0
      %1315 = vmatpush1.msra.mxu0 0.0
      %1316 = vmatprep.subr.mxu0 0.0
      %1317 = vmatpush1.msra.mxu0 0.0
      %1318 = vmatprep.subr.mxu0 0.0
      %1319 = vmatpush1.msra.mxu0 0.0
      %1320 = vmatprep.subr.mxu0 0.0
      %1321 = vmatpush1.msra.mxu0 0.0
      %1322 = vmatprep.subr.mxu0 0.0
      %1323 = vmatpush1.msra.mxu0 0.0
      %1324 = vmatprep.subr.mxu0 0.0
      %1325 = vmatpush1.msra.mxu0 0.0
      %1326 = vmatprep.subr.mxu0 0.0
      %1327 = vmatpush1.msra.mxu0 0.0
      %1328 = vmatprep.subr.mxu0 0.0
      %1329 = vmatpush1.msra.mxu0 %v1289
      %1330 = vmatprep.subr.mxu0 0.0
      %1331 = vmatpush1.msra.mxu0 %v1288
      %1332 = vmatprep.subr.mxu0 0.0
      %1333 = vmatpush2.msra.mxu0 0.0
      %1334 = vmatprep.subr.mxu0 0.0
      %1335 = vmatpush2.msra.mxu0 0.0
      %1336 = vmatprep.subr.mxu0 0.0
      %1337 = vmatpush2.msra.mxu0 0.0
      %1338 = vmatprep.subr.mxu0 0.0
      %1339 = vmatpush2.msra.mxu0 0.0
      %1340 = vmatprep.subr.mxu0 0.0
      %1341 = vmatpush2.msra.mxu0 0.0
      %1342 = vmatprep.subr.mxu0 0.0
      %1343 = vmatpush2.msra.mxu0 0.0
      %1344 = vmatprep.subr.mxu0 0.0
      %1345 = vmatpush2.msra.mxu0 0.0
      %1346 = vmatprep.subr.mxu0 0.0
      %1347 = vmatpush2.msra.mxu0 0.0
      %1348 = vmatprep.subr.mxu0 0.0
      %1349 = vmatpush2.msra.mxu0 0.0
      %1350 = vmatprep.subr.mxu0 0.0
      %1351 = vmatpush2.msra.mxu0 0.0
      %1352 = vmatprep.subr.mxu0 0.0
      %1353 = vmatpush2.msra.mxu0 0.0
      %1354 = vmatprep.subr.mxu0 0.0
      %1355 = vmatpush2.msra.mxu0 0.0
      %1356 = vmatprep.subr.mxu0 0.0
      %1357 = vmatpush2.msra.mxu0 0.0
      %1358 = vmatprep.subr.mxu0 0.0
      %1359 = vmatpush2.msra.mxu0 0.0
      %1360 = vmatprep.subr.mxu0 0.0
      %1361 = vmatpush2.msra.mxu0 0.0
      %1362 = vmatprep.subr.mxu0 0.0
      %1363 = vmatpush2.msra.mxu0 0.0
      %1364 = vmatprep.mubr.f32.mxu0 0.0
      %1365 = vmatmul.mubr.f32.gmra.mxu0 %v1295
      %v1366 = vpop.f32.mrf.mxu0
      %v1367 = vadd.f32 %v1292, %v1366
      %v1368 = vpop.f32.mrf.mxu0
      %1369 = vmatprep.mubr.f32.mxu0 0.0
      %1370 = vmatmul.mubr.f32.gmra.mxu0 %v1298
      %v1371 = vpop.f32.mrf.mxu0
      %v1372 = vadd.f32 %v1293, %v1371
      %v1373 = vpop.f32.mrf.mxu0
      %1374 = vdwg.mxu0
      %1376 = vset.pattern.permute.xlu0 0
      %1377 = vperm.xlu0 %1376, %v1367
      %v1378 = vpop.permute.xlu0 %1377
      %v1380 = vmul.f32 %v1197, %v1378
      %v1381 = vmul.f32 %v1198, %v1378
      %1383 = vset.pattern.permute.xlu0 0
      %1384 = vperm.xlu0 %1383, %v1372
      %v1385 = vpop.permute.xlu0 %1384
      %v1387 = vadd.f32 %v1380, %v1385
      %v1388 = vadd.f32 %v1381, %v1385
      %v1389 = vld [vmem:[%s18] sm:$0xff]
      %v1390 = vld [vmem:[%s19] sm:$0xff]
      %1392 = vset.pattern.permute.xlu0 0
      %1393 = vperm.xlu0 %1392, %v1390
      %v1394 = vpop.permute.xlu0 %1393
      %v1397 = vsel %vm849, %v1389, 0
      %1399 = vmatprep.subr.mxu0 0.0
      %1400 = vmatpush1.msra.mxu0 0.0
      %1401 = vmatprep.subr.mxu0 0.0
      %1402 = vmatpush1.msra.mxu0 0.0
      %1403 = vmatprep.subr.mxu0 0.0
      %1404 = vmatpush1.msra.mxu0 0.0
      %1405 = vmatprep.subr.mxu0 0.0
      %1406 = vmatpush1.msra.mxu0 0.0
      %1407 = vmatprep.subr.mxu0 0.0
      %1408 = vmatpush1.msra.mxu0 0.0
      %1409 = vmatprep.subr.mxu0 0.0
      %1410 = vmatpush1.msra.mxu0 0.0
      %1411 = vmatprep.subr.mxu0 0.0
      %1412 = vmatpush1.msra.mxu0 0.0
      %1413 = vmatprep.subr.mxu0 0.0
      %1414 = vmatpush1.msra.mxu0 0.0
      %1415 = vmatprep.subr.mxu0 0.0
      %1416 = vmatpush1.msra.mxu0 0.0
      %1417 = vmatprep.subr.mxu0 0.0
      %1418 = vmatpush1.msra.mxu0 0.0
      %1419 = vmatprep.subr.mxu0 0.0
      %1420 = vmatpush1.msra.mxu0 0.0
      %1421 = vmatprep.subr.mxu0 0.0
      %1422 = vmatpush1.msra.mxu0 0.0
      %1423 = vmatprep.subr.mxu0 0.0
      %1424 = vmatpush1.msra.mxu0 0.0
      %1425 = vmatprep.subr.mxu0 0.0
      %1426 = vmatpush1.msra.mxu0 0.0
      %1427 = vmatprep.subr.mxu0 0.0
      %1428 = vmatpush1.msra.mxu0 0.0
      %1429 = vmatprep.subr.mxu0 %v1388
      %1430 = vmatpush1.msra.mxu0 %v1387
      %1431 = vmatprep.subr.mxu0 0.0
      %1432 = vmatpush2.msra.mxu0 0.0
      %1433 = vmatprep.subr.mxu0 0.0
      %1434 = vmatpush2.msra.mxu0 0.0
      %1435 = vmatprep.subr.mxu0 0.0
      %1436 = vmatpush2.msra.mxu0 0.0
      %1437 = vmatprep.subr.mxu0 0.0
      %1438 = vmatpush2.msra.mxu0 0.0
      %1439 = vmatprep.subr.mxu0 0.0
      %1440 = vmatpush2.msra.mxu0 0.0
      %1441 = vmatprep.subr.mxu0 0.0
      %1442 = vmatpush2.msra.mxu0 0.0
      %1443 = vmatprep.subr.mxu0 0.0
      %1444 = vmatpush2.msra.mxu0 0.0
      %1445 = vmatprep.subr.mxu0 0.0
      %1446 = vmatpush2.msra.mxu0 0.0
      %1447 = vmatprep.subr.mxu0 0.0
      %1448 = vmatpush2.msra.mxu0 0.0
      %1449 = vmatprep.subr.mxu0 0.0
      %1450 = vmatpush2.msra.mxu0 0.0
      %1451 = vmatprep.subr.mxu0 0.0
      %1452 = vmatpush2.msra.mxu0 0.0
      %1453 = vmatprep.subr.mxu0 0.0
      %1454 = vmatpush2.msra.mxu0 0.0
      %1455 = vmatprep.subr.mxu0 0.0
      %1456 = vmatpush2.msra.mxu0 0.0
      %1457 = vmatprep.subr.mxu0 0.0
      %1458 = vmatpush2.msra.mxu0 0.0
      %1459 = vmatprep.subr.mxu0 0.0
      %1460 = vmatpush2.msra.mxu0 0.0
      %1461 = vmatprep.subr.mxu0 0.0
      %1462 = vmatpush2.msra.mxu0 0.0
      %1463 = vmatprep.mubr.f32.mxu0 0.0
      %1464 = vmatmul.mubr.f32.gmra.mxu0 %v1397
      %v1465 = vpop.f32.mrf.mxu0
      %v1466 = vadd.f32 %v1394, %v1465
      %v1467 = vpop.f32.mrf.mxu0
      %v1468 = vadd.f32 %v1394, %v1467
      %1469 = vdwg.mxu0
      %v1470 = vmax.f32 %v1466, 0.0
      %v1471 = vmax.f32 %v1468, 0.0
      %1472 = vst [vmem:[%s646] sm:$0xff] %v1470
      %1473 = vst [vmem:[%s646 + $0x8] sm:$0xff] %v1471
      %p1474 = scmp.lt.s32.totalorder %s31, 1
      %s1475 = scalar_select %p1474, %s31, 1
      %s1476 = smul.addr %s1475, 2
      %s1477 = smul.addr %s1476, 8
      %s1478 = scalar_lea.vmem %s20, %s1477
      // Predicated region
      $region101: #{sequential_forward.1} parent=99 // pred_check
        %p1479 = pneg %p479
      $region102: #{sequential_forward.1} parent=99 // pred_check_branch
        %1481 = sbr.rel (%p1479) target = $region104
      $region103: #{sequential_forward.1} parent=99 // pred_region
        _
      $region104: #{sequential_forward.1} parent=99 // pred_fallthru
        _
    $region100: #{sequential_forward.1} parent=5 // pred_fallthru
      _
    %p1482 = scmp.le.s32.totalorder 2, %s26
    // Predicated region
    $region105: #{sequential_forward.1} parent=5 // pred_check
      %p1483 = pneg %p1482
    $region106: #{sequential_forward.1} parent=5 // pred_check_branch
      %1485 = sbr.rel (%p1483) target = $region108
    $region107: #{sequential_forward.1} parent=5 // pred_region
      %s1486 = ssub.s32 %s26, 2
      // Predicated region
      $region109: #{sequential_forward.1} parent=107 // pred_check
        %p1487 = pneg %p485
      $region110: #{sequential_forward.1} parent=107 // pred_check_branch
        %1489 = sbr.rel (%p1487) target = $region112
      $region111: #{sequential_forward.1} parent=107 // pred_region
        %p1490 = scmp.lt.s32.totalorder %s32, 1
        %s1491 = scalar_select %p1490, %s32, 1
        %s1492 = smul.addr %s1491, 2
        %s1493 = smul.addr %s1492, 8
        %s1494 = scalar_lea.vmem %s20, %s1493
      $region112: #{sequential_forward.1} parent=107 // pred_fallthru
        _
    $region108: #{sequential_forward.1} parent=5 // pred_fallthru
      _
  $region6: #{sequential_forward.1} parent=0 // loop_footer
    %s30 = sadd.s32 1, %s26
  $region7: #{sequential_forward.1} parent=0 // loop_footer_branch
    %25 = sbr.rel target = $region3
  $region8: #{sequential_forward.1} parent=0 // loop_exit
    _

</llo_original>
